<compile_context>
chip_gen: v7x
topology: tpu7x:2x2x1
jax: 0.10.0
libtpu: 0.0.40
codegen_flags: <defaults>
</compile_context>

<pallas_src>
import functools

import jax
import jax.numpy as jnp
from jax.experimental import pallas as pl
from jax.experimental.pallas import tpu as pltpu


def _dwconv_bn_kernel(x_ref, w_ref, g_ref, b_ref, o_ref, xh_ref, *, H, W, eps):
    # x_ref : (N, H, W, CT)        un-padded input tile (one channel tile)
    # w_ref : (9, CT)              3x3 depthwise taps, flattened (dy*3 + dx)
    # g_ref, b_ref : (1, CT)       batchnorm gamma / beta
    # o_ref : (N, H, W, CT)
    # xh_ref: (N, H+2, W+2, CT) f32 VMEM scratch -> zero-halo padded copy
    N = o_ref.shape[0]
    CT = o_ref.shape[3]

    # ---- fused padding: zero-halo copy of the input in VMEM ------------------
    # (zero whole scratch each step: cheap, and safe under megacore sharding)
    xh_ref[...] = jnp.zeros_like(xh_ref)
    xh_ref[:, 1:H + 1, 1:W + 1, :] = x_ref[...].astype(jnp.float32)

    # ---- depthwise 3x3 conv ---------------------------------------------------
    # One width-shifted window load per kernel column (3 sublane-offset loads
    # total instead of 9); the row (H) offsets are major-axis slices -> free.
    acc = jnp.zeros(o_ref.shape, dtype=jnp.float32)
    for dx in range(3):
        xs = xh_ref[:, :, dx:dx + W, :]              # (N, H+2, W, CT)
        for dy in range(3):
            tap = w_ref[dy * 3 + dx, :]              # (CT,)
            acc = acc + xs[:, dy:dy + H, :, :] * tap  # broadcast over N,H,W

    # ---- batchnorm, training-mode batch stats (one-pass) ----------------------
    cnt = float(N * H * W)
    mean = jnp.sum(acc, axis=(0, 1, 2), keepdims=True) / cnt          # (1,1,1,CT)
    ex2 = jnp.sum(acc * acc, axis=(0, 1, 2), keepdims=True) / cnt
    var = ex2 - mean * mean                                           # biased var
    inv = jax.lax.rsqrt(var + eps)

    gamma = g_ref[...].reshape(1, 1, 1, CT)
    beta = b_ref[...].reshape(1, 1, 1, CT)
    scale = gamma * inv
    shift = beta - mean * scale
    o_ref[...] = (acc * scale + shift).astype(o_ref.dtype)


def _pick_channel_tile(C):
    # Wide channel tiles amortize the ~0.35us per-grid-step overhead; keep >=2
    # tiles so the "parallel" grid axis can shard across v7x's 2 TensorCores.
    # 512 is intentionally skipped (per-tap live working set would overflow the
    # 64-entry vreg file and spill).  C=3840 -> 384 (10 steps); demo 512 -> 256.
    for ct in (384, 256, 128):
        if C % ct == 0 and C // ct >= 2:
            return ct
    return C  # small-channel fallback: single tile


def dwconv_bn(x_nchw, weight_oihw, gamma, beta, *, eps=1e-5):
    """x_nchw: (N,C,H,W); weight_oihw: (C,1,3,3) depthwise; gamma/beta: (C,)."""
    N, C, H, W = x_nchw.shape
    assert weight_oihw.shape == (C, 1, 3, 3)

    # NCHW -> NHWC so channels map to the 128-lane axis.
    # TODO(synk): in an NHWC-native surrounding graph these two edge transposes
    # (and the output one) disappear; they exist only to match the PyTorch API.
    x = jnp.transpose(x_nchw, (0, 2, 3, 1))                  # (N,H,W,C)

    # (C,1,3,3) -> (9, C); BN params -> (1, C)
    w = jnp.transpose(weight_oihw[:, 0, :, :], (1, 2, 0)).reshape(9, C)
    g = gamma.reshape(1, C)
    b = beta.reshape(1, C)

    CT = _pick_channel_tile(C)
    assert C % CT == 0
    grid = (C // CT,)

    kernel = functools.partial(_dwconv_bn_kernel, H=H, W=W, eps=eps)

    out_nhwc = pl.pallas_call(
        kernel,
        out_shape=jax.ShapeDtypeStruct((N, H, W, C), x_nchw.dtype),
        grid_spec=pltpu.PrefetchScalarGridSpec(
            num_scalar_prefetch=0,
            grid=grid,
            in_specs=[
                pl.BlockSpec((N, H, W, CT), lambda c: (0, 0, 0, c)),
                pl.BlockSpec((9, CT), lambda c: (0, c)),
                pl.BlockSpec((1, CT), lambda c: (0, c)),
                pl.BlockSpec((1, CT), lambda c: (0, c)),
            ],
            out_specs=pl.BlockSpec((N, H, W, CT), lambda c: (0, 0, 0, c)),
            scratch_shapes=[pltpu.VMEM((N, H + 2, W + 2, CT), jnp.float32)],
        ),
        compiler_params=pltpu.CompilerParams(
            dimension_semantics=("parallel",)),
    )(x, w, g, b)

    # NHWC -> NCHW to match the PyTorch output convention
    return jnp.transpose(out_nhwc, (0, 3, 1, 2))


def _reference(x_nchw, weight_oihw, gamma, beta, eps=1e-5):
    C = x_nchw.shape[1]
    y = jax.lax.conv_general_dilated(
        x_nchw, weight_oihw, window_strides=(1, 1),
        padding=((1, 1), (1, 1)),
        dimension_numbers=("NCHW", "OIHW", "NCHW"),
        feature_group_count=C)
    mean = y.mean(axis=(0, 2, 3), keepdims=True)
    var = ((y - mean) ** 2).mean(axis=(0, 2, 3), keepdims=True)
    return ((y - mean) / jnp.sqrt(var + eps)) * gamma.reshape(1, -1, 1, 1) \
        + beta.reshape(1, -1, 1, 1)


if __name__ == "__main__":
    # Real module: N=1, C=3840, H=W=7 (tile picker -> CT=384, 10 grid steps).
    # Demo shrinks channels only: N=2, C=512, H=W=7 -> CT=256, grid=(2,).
    N, C, H, W = 2, 512, 7, 7

    key = jax.random.PRNGKey(0)
    kx, kw, kg, kb = jax.random.split(key, 4)
    x = jax.random.normal(kx, (N, C, H, W), dtype=jnp.float32)
    weight = jax.random.normal(kw, (C, 1, 3, 3), dtype=jnp.float32) * 0.1
    gamma = 1.0 + 0.1 * jax.random.normal(kg, (C,), dtype=jnp.float32)
    beta = 0.1 * jax.random.normal(kb, (C,), dtype=jnp.float32)

    out = jax.block_until_ready(dwconv_bn(x, weight, gamma, beta))
    ref = jax.block_until_ready(_reference(x, weight, gamma, beta))

    assert out.shape == (N, C, H, W)
    assert jnp.allclose(out, ref, atol=1e-3, rtol=1e-3), "mismatch vs reference"

    print("KERNEL_OK")
</pallas_src>

<mosaic_0001>
module attributes {stable_mosaic.version = 11 : i64} {
  func.func @_dwconv_bn_kernel(%arg0: i32, %arg1: memref<2x7x7x256xf32, #tpu.memory_space<vmem>>, %arg2: memref<9x256xf32, #tpu.memory_space<vmem>>, %arg3: memref<1x256xf32, #tpu.memory_space<vmem>>, %arg4: memref<1x256xf32, #tpu.memory_space<vmem>>, %arg5: memref<2x7x7x256xf32, #tpu.memory_space<vmem>>, %arg6: memref<2x9x9x256xf32, #tpu.memory_space<vmem>>) attributes {dimension_semantics = [#tpu.dimension_semantics<parallel>], iteration_bounds = array<i64: 2>, scalar_prefetch = 0 : i64, scratch_operands = 1 : i64, tpu.core_type = #tpu.core_type<tc>, window_params = [{transform_indices = @transform_0, window_bounds = array<i64: 2, 7, 7, 256>}, {transform_indices = @transform_1, window_bounds = array<i64: 9, 256>}, {transform_indices = @transform_2, window_bounds = array<i64: 1, 256>}, {transform_indices = @transform_3, window_bounds = array<i64: 1, 256>}, {transform_indices = @transform_4, window_bounds = array<i64: 2, 7, 7, 256>}]} {
    %cst = arith.constant 0.000000e+00 : f32
    %0 = vector.broadcast %cst : f32 to vector<2x9x9x256xf32>
    %c0 = arith.constant 0 : index
    %c0_0 = arith.constant 0 : index
    %c0_1 = arith.constant 0 : index
    %c0_2 = arith.constant 0 : index
    %1 = vector.load %arg6[%c0, %c0_0, %c0_1, %c0_2] : memref<2x9x9x256xf32, #tpu.memory_space<vmem>>, vector<2x9x9x256xf32>
    tpu.vector_store %arg6[%c0, %c0_0, %c0_1, %c0_2], %0 {strides = array<i32>} : memref<2x9x9x256xf32, #tpu.memory_space<vmem>>, vector<2x9x9x256xf32>,
    %c0_3 = arith.constant 0 : index
    %c0_4 = arith.constant 0 : index
    %c0_5 = arith.constant 0 : index
    %c0_6 = arith.constant 0 : index
    %2 = vector.load %arg1[%c0_3, %c0_4, %c0_5, %c0_6] : memref<2x7x7x256xf32, #tpu.memory_space<vmem>>, vector<2x7x7x256xf32>
    %c0_7 = arith.constant 0 : index
    %c1 = arith.constant 1 : index
    %c1_8 = arith.constant 1 : index
    %c0_9 = arith.constant 0 : index
    %3 = vector.load %arg6[%c0_7, %c1, %c1_8, %c0_9] : memref<2x9x9x256xf32, #tpu.memory_space<vmem>>, vector<2x7x7x256xf32>
    tpu.vector_store %arg6[%c0_7, %c1, %c1_8, %c0_9], %2 {strides = array<i32>} : memref<2x9x9x256xf32, #tpu.memory_space<vmem>>, vector<2x7x7x256xf32>,
    %cst_10 = arith.constant 0.000000e+00 : f32
    %4 = vector.broadcast %cst_10 : f32 to vector<2x7x7x256xf32>
    %c0_11 = arith.constant 0 : index
    %c0_12 = arith.constant 0 : index
    %c0_13 = arith.constant 0 : index
    %c0_14 = arith.constant 0 : index
    %5 = vector.load %arg6[%c0_11, %c0_12, %c0_13, %c0_14] : memref<2x9x9x256xf32, #tpu.memory_space<vmem>>, vector<2x9x7x256xf32>
    %c0_15 = arith.constant 0 : index
    %c0_16 = arith.constant 0 : index
    %6 = vector.load %arg2[%c0_15, %c0_16] : memref<9x256xf32, #tpu.memory_space<vmem>>, vector<1x256xf32>
    %7 = vector.shape_cast %6 : vector<1x256xf32> to vector<256xf32>
    %8 = vector.extract_strided_slice %5 {offsets = [0, 0, 0, 0], sizes = [2, 7, 7, 256], strides = [1, 1, 1, 1]} : vector<2x9x7x256xf32> to vector<2x7x7x256xf32>
    %9 = vector.shape_cast %7 : vector<256xf32> to vector<1x1x1x256xf32>
    %10 = vector.broadcast %9 : vector<1x1x1x256xf32> to vector<2x7x7x256xf32>
    %11 = arith.mulf %8, %10 : vector<2x7x7x256xf32>
    %12 = arith.addf %4, %11 : vector<2x7x7x256xf32>
    %c3 = arith.constant 3 : index
    %c0_17 = arith.constant 0 : index
    %13 = vector.load %arg2[%c3, %c0_17] : memref<9x256xf32, #tpu.memory_space<vmem>>, vector<1x256xf32>
    %14 = vector.shape_cast %13 : vector<1x256xf32> to vector<256xf32>
    %15 = vector.extract_strided_slice %5 {offsets = [0, 1, 0, 0], sizes = [2, 7, 7, 256], strides = [1, 1, 1, 1]} : vector<2x9x7x256xf32> to vector<2x7x7x256xf32>
    %16 = vector.shape_cast %14 : vector<256xf32> to vector<1x1x1x256xf32>
    %17 = vector.broadcast %16 : vector<1x1x1x256xf32> to vector<2x7x7x256xf32>
    %18 = arith.mulf %15, %17 : vector<2x7x7x256xf32>
    %19 = arith.addf %12, %18 : vector<2x7x7x256xf32>
    %c6 = arith.constant 6 : index
    %c0_18 = arith.constant 0 : index
    %20 = vector.load %arg2[%c6, %c0_18] : memref<9x256xf32, #tpu.memory_space<vmem>>, vector<1x256xf32>
    %21 = vector.shape_cast %20 : vector<1x256xf32> to vector<256xf32>
    %22 = vector.extract_strided_slice %5 {offsets = [0, 2, 0, 0], sizes = [2, 7, 7, 256], strides = [1, 1, 1, 1]} : vector<2x9x7x256xf32> to vector<2x7x7x256xf32>
    %23 = vector.shape_cast %21 : vector<256xf32> to vector<1x1x1x256xf32>
    %24 = vector.broadcast %23 : vector<1x1x1x256xf32> to vector<2x7x7x256xf32>
    %25 = arith.mulf %22, %24 : vector<2x7x7x256xf32>
    %26 = arith.addf %19, %25 : vector<2x7x7x256xf32>
    %c0_19 = arith.constant 0 : index
    %c0_20 = arith.constant 0 : index
    %c1_21 = arith.constant 1 : index
    %c0_22 = arith.constant 0 : index
    %27 = vector.load %arg6[%c0_19, %c0_20, %c1_21, %c0_22] : memref<2x9x9x256xf32, #tpu.memory_space<vmem>>, vector<2x9x7x256xf32>
    %c1_23 = arith.constant 1 : index
    %c0_24 = arith.constant 0 : index
    %28 = vector.load %arg2[%c1_23, %c0_24] : memref<9x256xf32, #tpu.memory_space<vmem>>, vector<1x256xf32>
    %29 = vector.shape_cast %28 : vector<1x256xf32> to vector<256xf32>
    %30 = vector.extract_strided_slice %27 {offsets = [0, 0, 0, 0], sizes = [2, 7, 7, 256], strides = [1, 1, 1, 1]} : vector<2x9x7x256xf32> to vector<2x7x7x256xf32>
    %31 = vector.shape_cast %29 : vector<256xf32> to vector<1x1x1x256xf32>
    %32 = vector.broadcast %31 : vector<1x1x1x256xf32> to vector<2x7x7x256xf32>
    %33 = arith.mulf %30, %32 : vector<2x7x7x256xf32>
    %34 = arith.addf %26, %33 : vector<2x7x7x256xf32>
    %c4 = arith.constant 4 : index
    %c0_25 = arith.constant 0 : index
    %35 = vector.load %arg2[%c4, %c0_25] : memref<9x256xf32, #tpu.memory_space<vmem>>, vector<1x256xf32>
    %36 = vector.shape_cast %35 : vector<1x256xf32> to vector<256xf32>
    %37 = vector.extract_strided_slice %27 {offsets = [0, 1, 0, 0], sizes = [2, 7, 7, 256], strides = [1, 1, 1, 1]} : vector<2x9x7x256xf32> to vector<2x7x7x256xf32>
    %38 = vector.shape_cast %36 : vector<256xf32> to vector<1x1x1x256xf32>
    %39 = vector.broadcast %38 : vector<1x1x1x256xf32> to vector<2x7x7x256xf32>
    %40 = arith.mulf %37, %39 : vector<2x7x7x256xf32>
    %41 = arith.addf %34, %40 : vector<2x7x7x256xf32>
    %c7 = arith.constant 7 : index
    %c0_26 = arith.constant 0 : index
    %42 = vector.load %arg2[%c7, %c0_26] : memref<9x256xf32, #tpu.memory_space<vmem>>, vector<1x256xf32>
    %43 = vector.shape_cast %42 : vector<1x256xf32> to vector<256xf32>
    %44 = vector.extract_strided_slice %27 {offsets = [0, 2, 0, 0], sizes = [2, 7, 7, 256], strides = [1, 1, 1, 1]} : vector<2x9x7x256xf32> to vector<2x7x7x256xf32>
    %45 = vector.shape_cast %43 : vector<256xf32> to vector<1x1x1x256xf32>
    %46 = vector.broadcast %45 : vector<1x1x1x256xf32> to vector<2x7x7x256xf32>
    %47 = arith.mulf %44, %46 : vector<2x7x7x256xf32>
    %48 = arith.addf %41, %47 : vector<2x7x7x256xf32>
    %c0_27 = arith.constant 0 : index
    %c0_28 = arith.constant 0 : index
    %c2 = arith.constant 2 : index
    %c0_29 = arith.constant 0 : index
    %49 = vector.load %arg6[%c0_27, %c0_28, %c2, %c0_29] : memref<2x9x9x256xf32, #tpu.memory_space<vmem>>, vector<2x9x7x256xf32>
    %c2_30 = arith.constant 2 : index
    %c0_31 = arith.constant 0 : index
    %50 = vector.load %arg2[%c2_30, %c0_31] : memref<9x256xf32, #tpu.memory_space<vmem>>, vector<1x256xf32>
    %51 = vector.shape_cast %50 : vector<1x256xf32> to vector<256xf32>
    %52 = vector.extract_strided_slice %49 {offsets = [0, 0, 0, 0], sizes = [2, 7, 7, 256], strides = [1, 1, 1, 1]} : vector<2x9x7x256xf32> to vector<2x7x7x256xf32>
    %53 = vector.shape_cast %51 : vector<256xf32> to vector<1x1x1x256xf32>
    %54 = vector.broadcast %53 : vector<1x1x1x256xf32> to vector<2x7x7x256xf32>
    %55 = arith.mulf %52, %54 : vector<2x7x7x256xf32>
    %56 = arith.addf %48, %55 : vector<2x7x7x256xf32>
    %c5 = arith.constant 5 : index
    %c0_32 = arith.constant 0 : index
    %57 = vector.load %arg2[%c5, %c0_32] : memref<9x256xf32, #tpu.memory_space<vmem>>, vector<1x256xf32>
    %58 = vector.shape_cast %57 : vector<1x256xf32> to vector<256xf32>
    %59 = vector.extract_strided_slice %49 {offsets = [0, 1, 0, 0], sizes = [2, 7, 7, 256], strides = [1, 1, 1, 1]} : vector<2x9x7x256xf32> to vector<2x7x7x256xf32>
    %60 = vector.shape_cast %58 : vector<256xf32> to vector<1x1x1x256xf32>
    %61 = vector.broadcast %60 : vector<1x1x1x256xf32> to vector<2x7x7x256xf32>
    %62 = arith.mulf %59, %61 : vector<2x7x7x256xf32>
    %63 = arith.addf %56, %62 : vector<2x7x7x256xf32>
    %c8 = arith.constant 8 : index
    %c0_33 = arith.constant 0 : index
    %64 = vector.load %arg2[%c8, %c0_33] : memref<9x256xf32, #tpu.memory_space<vmem>>, vector<1x256xf32>
    %65 = vector.shape_cast %64 : vector<1x256xf32> to vector<256xf32>
    %66 = vector.extract_strided_slice %49 {offsets = [0, 2, 0, 0], sizes = [2, 7, 7, 256], strides = [1, 1, 1, 1]} : vector<2x9x7x256xf32> to vector<2x7x7x256xf32>
    %67 = vector.shape_cast %65 : vector<256xf32> to vector<1x1x1x256xf32>
    %68 = vector.broadcast %67 : vector<1x1x1x256xf32> to vector<2x7x7x256xf32>
    %69 = arith.mulf %66, %68 : vector<2x7x7x256xf32>
    %70 = arith.addf %63, %69 : vector<2x7x7x256xf32>
    %cst_34 = arith.constant dense<0.000000e+00> : vector<256xf32>
    %71 = vector.multi_reduction <add>, %70, %cst_34 [0, 1, 2] : vector<2x7x7x256xf32> to vector<256xf32>
    %72 = vector.shape_cast %71 : vector<256xf32> to vector<1x1x1x256xf32>
    %cst_35 = arith.constant 9.800000e+01 : f32
    %73 = vector.broadcast %cst_35 : f32 to vector<1x1x1x256xf32>
    %74 = arith.divf %72, %73 : vector<1x1x1x256xf32>
    %75 = arith.mulf %70, %70 : vector<2x7x7x256xf32>
    %cst_36 = arith.constant dense<0.000000e+00> : vector<256xf32>
    %76 = vector.multi_reduction <add>, %75, %cst_36 [0, 1, 2] : vector<2x7x7x256xf32> to vector<256xf32>
    %77 = vector.shape_cast %76 : vector<256xf32> to vector<1x1x1x256xf32>
    %cst_37 = arith.constant 9.800000e+01 : f32
    %78 = vector.broadcast %cst_37 : f32 to vector<1x1x1x256xf32>
    %79 = arith.divf %77, %78 : vector<1x1x1x256xf32>
    %80 = arith.mulf %74, %74 : vector<1x1x1x256xf32>
    %81 = arith.subf %79, %80 : vector<1x1x1x256xf32>
    %cst_38 = arith.constant 9.99999974E-6 : f32
    %82 = vector.broadcast %cst_38 : f32 to vector<1x1x1x256xf32>
    %83 = arith.addf %81, %82 : vector<1x1x1x256xf32>
    %84 = math.rsqrt %83 : vector<1x1x1x256xf32>
    %c0_39 = arith.constant 0 : index
    %c0_40 = arith.constant 0 : index
    %85 = vector.load %arg3[%c0_39, %c0_40] : memref<1x256xf32, #tpu.memory_space<vmem>>, vector<1x256xf32>
    %86 = vector.shape_cast %85 : vector<1x256xf32> to vector<1x1x1x256xf32>
    %c0_41 = arith.constant 0 : index
    %c0_42 = arith.constant 0 : index
    %87 = vector.load %arg4[%c0_41, %c0_42] : memref<1x256xf32, #tpu.memory_space<vmem>>, vector<1x256xf32>
    %88 = vector.shape_cast %87 : vector<1x256xf32> to vector<1x1x1x256xf32>
    %89 = arith.mulf %86, %84 : vector<1x1x1x256xf32>
    %90 = arith.mulf %74, %89 : vector<1x1x1x256xf32>
    %91 = arith.subf %88, %90 : vector<1x1x1x256xf32>
    %92 = vector.broadcast %89 : vector<1x1x1x256xf32> to vector<2x7x7x256xf32>
    %93 = arith.mulf %70, %92 : vector<2x7x7x256xf32>
    %94 = vector.broadcast %91 : vector<1x1x1x256xf32> to vector<2x7x7x256xf32>
    %95 = arith.addf %93, %94 : vector<2x7x7x256xf32>
    %c0_43 = arith.constant 0 : index
    %c0_44 = arith.constant 0 : index
    %c0_45 = arith.constant 0 : index
    %c0_46 = arith.constant 0 : index
    %96 = vector.load %arg5[%c0_43, %c0_44, %c0_45, %c0_46] : memref<2x7x7x256xf32, #tpu.memory_space<vmem>>, vector<2x7x7x256xf32>
    tpu.vector_store %arg5[%c0_43, %c0_44, %c0_45, %c0_46], %95 {strides = array<i32>} : memref<2x7x7x256xf32, #tpu.memory_space<vmem>>, vector<2x7x7x256xf32>,
    return
  }
  func.func @transform_0(%arg0: i32) -> (i32, i32, i32, i32) {
    %c0_i32 = arith.constant 0 : i32
    %c0_i32_0 = arith.constant 0 : i32
    %c0_i32_1 = arith.constant 0 : i32
    %c0_i32_2 = arith.constant 0 : i32
    return %c0_i32, %c0_i32_0, %c0_i32_1, %arg0 : i32, i32, i32, i32
  }
  func.func @transform_1(%arg0: i32) -> (i32, i32) {
    %c0_i32 = arith.constant 0 : i32
    %c0_i32_0 = arith.constant 0 : i32
    return %c0_i32, %arg0 : i32, i32
  }
  func.func @transform_2(%arg0: i32) -> (i32, i32) {
    %c0_i32 = arith.constant 0 : i32
    %c0_i32_0 = arith.constant 0 : i32
    return %c0_i32, %arg0 : i32, i32
  }
  func.func @transform_3(%arg0: i32) -> (i32, i32) {
    %c0_i32 = arith.constant 0 : i32
    %c0_i32_0 = arith.constant 0 : i32
    return %c0_i32, %arg0 : i32, i32
  }
  func.func @transform_4(%arg0: i32) -> (i32, i32, i32, i32) {
    %c0_i32 = arith.constant 0 : i32
    %c0_i32_0 = arith.constant 0 : i32
    %c0_i32_1 = arith.constant 0 : i32
    %c0_i32_2 = arith.constant 0 : i32
    return %c0_i32, %c0_i32_0, %c0_i32_1, %arg0 : i32, i32, i32, i32
  }
}

</mosaic_0001>

<llo_original>
// kernel: tpu_custom_call.1
$region0: #{tpu_custom_call.1}
  #allocation0 [shape = 'u32[]', space=smem, size = 0x4, offset = 0x4, fixed_abs, tag = 'smem constant byte address 0x4 - core index']
  #allocation1 [shape = 'u32[144,128]{1,0:T(1,128)}', space=vmem, size = 0x12000, scoped, tag = 'internal scratch']
  #allocation2 [shape = 'f32[2,9,9,256]{3,2,1,0:T(8,128)}', space=vmem, size = 0x48000, scoped, tag = 'scratch operand']
  %s0 = inlined_call_operand.vmem [shape: f32[2,7,7,512], index: 0, kind: input, shape index: {}]
  %s1 = inlined_call_operand.vmem [shape: f32[9,512], index: 1, kind: input, shape index: {}]
  %s2 = inlined_call_operand.vmem [shape: f32[1,512], index: 2, kind: input, shape index: {}]
  %s3 = inlined_call_operand.vmem [shape: f32[1,512], index: 3, kind: input, shape index: {}]
  %s4 = inlined_call_operand.vmem [shape: f32[2,7,7,512], index: 4, kind: output, shape index: {}]
  %s5 = sld [smem:[#allocation0]]
  $region114: #{tpu_custom_call.1} parent=0
    _
  %s7 = ssub.s32 1, %s5
  %s8 = scalar_select 0, %s7, %s5
  $region1: #{tpu_custom_call.1} parent=0
    #allocation3 [shape = 'u8[229376]{0}', space=vmem, size = 0x38000, scoped, tag = 'input window, operand 0']
    #allocation4 [shape = 'u8[32768]{0}', space=vmem, size = 0x8000, scoped, tag = 'input window, operand 1']
    #allocation5 [shape = 'u8[229376]{0}', space=vmem, size = 0x38000, scoped, tag = 'output window, operand 0']
    loop: start=0, step=1, limit=4
    $region2: #{tpu_custom_call.1} parent=1 // loop_pre_header
      _
    $region3: #{tpu_custom_call.1} parent=1 // loop_header
      %s10 = sphi 0, %s14
      %p11 = scmp.ge.s32.totalorder %s10, 4
      %s20 = sphi 0, %s22
      %s23 = sphi 0, %s20
      %s24 = sphi 0, %s23
      %s40 = sphi 0, %s24
      %s46 = sphi 0, %s48
      %s49 = sphi 0, %s46
      %s50 = sphi 0, %s49
      %s66 = sphi 0, %s50
      %s72 = sphi 0, %s74
      %s75 = sphi 0, %s72
      %s76 = sphi 0, %s75
      %s92 = sphi 0, %s76
      %s98 = sphi 0, %s100
      %s101 = sphi 0, %s98
      %s102 = sphi 0, %s101
      %s118 = sphi 0, %s102
      %s124 = sphi 0, %s126
      %s127 = sphi 0, %s124
      %s128 = sphi 0, %s127
      %s144 = sphi 0, %s128
    $region4: #{tpu_custom_call.1} parent=1 // loop_header_branch
      %13 = sbr.rel (%p11) target = $region8
    $region5: #{tpu_custom_call.1} parent=1 // loop_body
      %s15 = ssub.s32 %s10, 1
      %s16 = ssub.s32 %s10, 2
      %s17 = sadd.s32 %s10, 1
      %s18 = ssub.s32 %s10, %s17
      %p19 = scmp.eq.s32.totalorder %s18, 0
      %s21 = sadd.s32 %s20, 1
      %s22 = scalar_select %p19, %s20, %s21
      %p25 = pneg %p19
      %p26 = scmp.eq.s32.totalorder %s10, 1
      %p27 = por %p25, %p26
      %p28 = scmp.ne.s32.totalorder %s20, %s23
      %p29 = scmp.eq.s32.totalorder %s10, 0
      %p30 = por %p28, %p29
      %p31 = scmp.ne.s32.totalorder %s20, %s23
      %p32 = scmp.eq.s32.totalorder %s15, 1
      %p33 = por %p31, %p32
      %p34 = scmp.ne.s32.totalorder %s23, %s24
      %p35 = scmp.eq.s32.totalorder %s15, 0
      %p36 = por %p34, %p35
      %p37 = scmp.ne.s32.totalorder %s23, %s24
      %p38 = scmp.eq.s32.totalorder %s16, 1
      %p39 = por %p37, %p38
      %p41 = scmp.ne.s32.totalorder %s24, %s40
      %p42 = scmp.eq.s32.totalorder %s16, 0
      %p43 = por %p41, %p42
      %s44 = ssub.s32 %s10, %s17
      %p45 = scmp.eq.s32.totalorder %s44, 0
      %s47 = sadd.s32 %s46, 1
      %s48 = scalar_select %p45, %s46, %s47
      %p51 = pneg %p45
      %p52 = scmp.eq.s32.totalorder %s10, 1
      %p53 = por %p51, %p52
      %p54 = scmp.ne.s32.totalorder %s46, %s49
      %p55 = scmp.eq.s32.totalorder %s10, 0
      %p56 = por %p54, %p55
      %p57 = scmp.ne.s32.totalorder %s46, %s49
      %p58 = scmp.eq.s32.totalorder %s15, 1
      %p59 = por %p57, %p58
      %p60 = scmp.ne.s32.totalorder %s49, %s50
      %p61 = scmp.eq.s32.totalorder %s15, 0
      %p62 = por %p60, %p61
      %p63 = scmp.ne.s32.totalorder %s49, %s50
      %p64 = scmp.eq.s32.totalorder %s16, 1
      %p65 = por %p63, %p64
      %p67 = scmp.ne.s32.totalorder %s50, %s66
      %p68 = scmp.eq.s32.totalorder %s16, 0
      %p69 = por %p67, %p68
      %s70 = ssub.s32 %s10, %s17
      %p71 = scmp.eq.s32.totalorder %s70, 0
      %s73 = sadd.s32 %s72, 1
      %s74 = scalar_select %p71, %s72, %s73
      %p77 = pneg %p71
      %p78 = scmp.eq.s32.totalorder %s10, 1
      %p79 = por %p77, %p78
      %p80 = scmp.ne.s32.totalorder %s72, %s75
      %p81 = scmp.eq.s32.totalorder %s10, 0
      %p82 = por %p80, %p81
      %p83 = scmp.ne.s32.totalorder %s72, %s75
      %p84 = scmp.eq.s32.totalorder %s15, 1
      %p85 = por %p83, %p84
      %p86 = scmp.ne.s32.totalorder %s75, %s76
      %p87 = scmp.eq.s32.totalorder %s15, 0
      %p88 = por %p86, %p87
      %p89 = scmp.ne.s32.totalorder %s75, %s76
      %p90 = scmp.eq.s32.totalorder %s16, 1
      %p91 = por %p89, %p90
      %p93 = scmp.ne.s32.totalorder %s76, %s92
      %p94 = scmp.eq.s32.totalorder %s16, 0
      %p95 = por %p93, %p94
      %s96 = ssub.s32 %s10, %s17
      %p97 = scmp.eq.s32.totalorder %s96, 0
      %s99 = sadd.s32 %s98, 1
      %s100 = scalar_select %p97, %s98, %s99
      %p103 = pneg %p97
      %p104 = scmp.eq.s32.totalorder %s10, 1
      %p105 = por %p103, %p104
      %p106 = scmp.ne.s32.totalorder %s98, %s101
      %p107 = scmp.eq.s32.totalorder %s10, 0
      %p108 = por %p106, %p107
      %p109 = scmp.ne.s32.totalorder %s98, %s101
      %p110 = scmp.eq.s32.totalorder %s15, 1
      %p111 = por %p109, %p110
      %p112 = scmp.ne.s32.totalorder %s101, %s102
      %p113 = scmp.eq.s32.totalorder %s15, 0
      %p114 = por %p112, %p113
      %p115 = scmp.ne.s32.totalorder %s101, %s102
      %p116 = scmp.eq.s32.totalorder %s16, 1
      %p117 = por %p115, %p116
      %p119 = scmp.ne.s32.totalorder %s102, %s118
      %p120 = scmp.eq.s32.totalorder %s16, 0
      %p121 = por %p119, %p120
      %s122 = ssub.s32 %s10, %s17
      %p123 = scmp.eq.s32.totalorder %s122, 0
      %s125 = sadd.s32 %s124, 1
      %s126 = scalar_select %p123, %s124, %s125
      %p129 = pneg %p123
      %p130 = scmp.eq.s32.totalorder %s10, 1
      %p131 = por %p129, %p130
      %p132 = scmp.ne.s32.totalorder %s124, %s127
      %p133 = scmp.eq.s32.totalorder %s10, 0
      %p134 = por %p132, %p133
      %p135 = scmp.ne.s32.totalorder %s124, %s127
      %p136 = scmp.eq.s32.totalorder %s15, 1
      %p137 = por %p135, %p136
      %p138 = scmp.ne.s32.totalorder %s127, %s128
      %p139 = scmp.eq.s32.totalorder %s15, 0
      %p140 = por %p138, %p139
      %p141 = scmp.ne.s32.totalorder %s127, %s128
      %p142 = scmp.eq.s32.totalorder %s16, 1
      %p143 = por %p141, %p142
      %p145 = scmp.ne.s32.totalorder %s128, %s144
      %p146 = scmp.eq.s32.totalorder %s16, 0
      %p147 = por %p145, %p146
      %p148 = scmp.le.s32.totalorder 1, %s10
      %p149 = scmp.lt.s32.totalorder %s10, 3
      %p150 = pnand %p148, %p149
      %p151 = pneg %p150
      // Predicated region
      $region9: #{tpu_custom_call.1} parent=5 // pred_check
        _
      $region10: #{tpu_custom_call.1} parent=5 // pred_check_branch
        %153 = sbr.rel (%p150) target = $region12
      $region11: #{tpu_custom_call.1} parent=5 // pred_region
        %s154 = ssub.s32 %s10, 1
      $region12: #{tpu_custom_call.1} parent=5 // pred_fallthru
        _
      %p155 = scmp.lt.s32.totalorder %s10, 2
      // Predicated region
      $region13: #{tpu_custom_call.1} parent=5 // pred_check
        %p156 = pneg %p155
      $region14: #{tpu_custom_call.1} parent=5 // pred_check_branch
        %158 = sbr.rel (%p156) target = $region16
      $region15: #{tpu_custom_call.1} parent=5 // pred_region
        // Predicated region
        $region17: #{tpu_custom_call.1} parent=15 // pred_check
          %p159 = pneg %p30
        $region18: #{tpu_custom_call.1} parent=15 // pred_check_branch
          %161 = sbr.rel (%p159) target = $region20
        $region19: #{tpu_custom_call.1} parent=15 // pred_region
          %s162 = sand.u32 %s20, 1
          %s163 = sand.u32 %s20, 1
          %s164 = smul.addr %s163, 224
          %s165 = scalar_lea.vmem [#allocation3], %s164
          %s166 = smul.u32 2, %s10
          %s167 = smul.addr %s166, 8
          %s168 = scalar_lea.vmem %s0, %s167
          // Predicated region
          $region21: #{tpu_custom_call.1} parent=19 // pred_check
            _
          $region22: #{tpu_custom_call.1} parent=19 // pred_check_branch
            %170 = sbr.rel (0) target = $region24
          $region23: #{tpu_custom_call.1} parent=19 // pred_region
            // Predicated region
            $region25: #{tpu_custom_call.1} parent=23 // pred_check
              _
            $region26: #{tpu_custom_call.1} parent=23 // pred_check_branch
              %172 = sbr.rel (0) target = $region28
            $region27: #{tpu_custom_call.1} parent=23 // pred_region
              loop: start=0, step=1, limit=1
              $region29: #{tpu_custom_call.1} parent=27 // loop_pre_header
                _
              $region30: #{tpu_custom_call.1} parent=27 // loop_header
                %s174 = sphi 0, %s178
                %p175 = scmp.ge.s32.totalorder %s174, 1
                %s179 = sphi %s168, %s168
                %s180 = sphi %s165, %s165
              $region31: #{tpu_custom_call.1} parent=27 // loop_header_branch
                %177 = sbr.rel (%p175) target = $region35
              $region32: #{tpu_custom_call.1} parent=27 // loop_body
                %v181 = vld [vmem:[%s179] sm:$0xff]
                %182 = vst [vmem:[%s180] sm:$0xff] %v181
                %v183 = vld [vmem:[%s179 + $0x8] sm:$0xff]
                %184 = vst [vmem:[%s180 + $0x8] sm:$0xff] %v183
                %v185 = vld [vmem:[%s179 + $0x20] sm:$0xff]
                %186 = vst [vmem:[%s180 + $0x10] sm:$0xff] %v185
                %v187 = vld [vmem:[%s179 + $0x28] sm:$0xff]
                %188 = vst [vmem:[%s180 + $0x18] sm:$0xff] %v187
                %v189 = vld [vmem:[%s179 + $0x40] sm:$0xff]
                %190 = vst [vmem:[%s180 + $0x20] sm:$0xff] %v189
                %v191 = vld [vmem:[%s179 + $0x48] sm:$0xff]
                %192 = vst [vmem:[%s180 + $0x28] sm:$0xff] %v191
                %v193 = vld [vmem:[%s179 + $0x60] sm:$0xff]
                %194 = vst [vmem:[%s180 + $0x30] sm:$0xff] %v193
                %v195 = vld [vmem:[%s179 + $0x68] sm:$0xff]
                %196 = vst [vmem:[%s180 + $0x38] sm:$0xff] %v195
                %v197 = vld [vmem:[%s179 + $0x80] sm:$0xff]
                %198 = vst [vmem:[%s180 + $0x40] sm:$0xff] %v197
                %v199 = vld [vmem:[%s179 + $0x88] sm:$0xff]
                %200 = vst [vmem:[%s180 + $0x48] sm:$0xff] %v199
                %v201 = vld [vmem:[%s179 + $0xa0] sm:$0xff]
                %202 = vst [vmem:[%s180 + $0x50] sm:$0xff] %v201
                %v203 = vld [vmem:[%s179 + $0xa8] sm:$0xff]
                %204 = vst [vmem:[%s180 + $0x58] sm:$0xff] %v203
                %v205 = vld [vmem:[%s179 + $0xc0] sm:$0xff]
                %206 = vst [vmem:[%s180 + $0x60] sm:$0xff] %v205
                %v207 = vld [vmem:[%s179 + $0xc8] sm:$0xff]
                %208 = vst [vmem:[%s180 + $0x68] sm:$0xff] %v207
                %v209 = vld [vmem:[%s179 + $0xe0] sm:$0xff]
                %210 = vst [vmem:[%s180 + $0x70] sm:$0xff] %v209
                %v211 = vld [vmem:[%s179 + $0xe8] sm:$0xff]
                %212 = vst [vmem:[%s180 + $0x78] sm:$0xff] %v211
                %v213 = vld [vmem:[%s179 + $0x100] sm:$0xff]
                %214 = vst [vmem:[%s180 + $0x80] sm:$0xff] %v213
                %v215 = vld [vmem:[%s179 + $0x108] sm:$0xff]
                %216 = vst [vmem:[%s180 + $0x88] sm:$0xff] %v215
                %v217 = vld [vmem:[%s179 + $0x120] sm:$0xff]
                %218 = vst [vmem:[%s180 + $0x90] sm:$0xff] %v217
                %v219 = vld [vmem:[%s179 + $0x128] sm:$0xff]
                %220 = vst [vmem:[%s180 + $0x98] sm:$0xff] %v219
                %v221 = vld [vmem:[%s179 + $0x140] sm:$0xff]
                %222 = vst [vmem:[%s180 + $0xa0] sm:$0xff] %v221
                %v223 = vld [vmem:[%s179 + $0x148] sm:$0xff]
                %224 = vst [vmem:[%s180 + $0xa8] sm:$0xff] %v223
                %v225 = vld [vmem:[%s179 + $0x160] sm:$0xff]
                %226 = vst [vmem:[%s180 + $0xb0] sm:$0xff] %v225
                %v227 = vld [vmem:[%s179 + $0x168] sm:$0xff]
                %228 = vst [vmem:[%s180 + $0xb8] sm:$0xff] %v227
                %v229 = vld [vmem:[%s179 + $0x180] sm:$0xff]
                %230 = vst [vmem:[%s180 + $0xc0] sm:$0xff] %v229
                %v231 = vld [vmem:[%s179 + $0x188] sm:$0xff]
                %232 = vst [vmem:[%s180 + $0xc8] sm:$0xff] %v231
                %v233 = vld [vmem:[%s179 + $0x1a0] sm:$0xff]
                %234 = vst [vmem:[%s180 + $0xd0] sm:$0xff] %v233
                %v235 = vld [vmem:[%s179 + $0x1a8] sm:$0xff]
                %236 = vst [vmem:[%s180 + $0xd8] sm:$0xff] %v235
              $region33: #{tpu_custom_call.1} parent=27 // loop_footer
                %s178 = sadd.s32 1, %s174
              $region34: #{tpu_custom_call.1} parent=27 // loop_footer_branch
                %173 = sbr.rel target = $region30
              $region35: #{tpu_custom_call.1} parent=27 // loop_exit
                _
            $region28: #{tpu_custom_call.1} parent=23 // pred_fallthru
              _
            // Predicated region
            $region36: #{tpu_custom_call.1} parent=23 // pred_check
              _
            $region37: #{tpu_custom_call.1} parent=23 // pred_check_branch
              %238 = sbr.rel target = $region39
            $region38: #{tpu_custom_call.1} parent=23 // pred_region
              _
            $region39: #{tpu_custom_call.1} parent=23 // pred_fallthru
              _
          $region24: #{tpu_custom_call.1} parent=19 // pred_fallthru
            _
          %239 = vnop
        $region20: #{tpu_custom_call.1} parent=15 // pred_fallthru
          _
        // Predicated region
        $region40: #{tpu_custom_call.1} parent=15 // pred_check
          %p240 = pneg %p56
        $region41: #{tpu_custom_call.1} parent=15 // pred_check_branch
          %242 = sbr.rel (%p240) target = $region43
        $region42: #{tpu_custom_call.1} parent=15 // pred_region
          %s243 = sand.u32 %s46, 1
          %s244 = sand.u32 %s46, 1
          %s245 = smul.addr %s244, 32
          %s246 = scalar_lea.vmem [#allocation4], %s245
          %s247 = smul.u32 2, %s10
          %s248 = smul.addr %s247, 8
          %s249 = scalar_lea.vmem %s1, %s248
          // Predicated region
          $region44: #{tpu_custom_call.1} parent=42 // pred_check
            _
          $region45: #{tpu_custom_call.1} parent=42 // pred_check_branch
            %251 = sbr.rel (0) target = $region47
          $region46: #{tpu_custom_call.1} parent=42 // pred_region
            // Predicated region
            $region48: #{tpu_custom_call.1} parent=46 // pred_check
              _
            $region49: #{tpu_custom_call.1} parent=46 // pred_check_branch
              %253 = sbr.rel (0) target = $region51
            $region50: #{tpu_custom_call.1} parent=46 // pred_region
              loop: start=0, step=1, limit=1
              $region52: #{tpu_custom_call.1} parent=50 // loop_pre_header
                _
              $region53: #{tpu_custom_call.1} parent=50 // loop_header
                %s255 = sphi 0, %s259
                %p256 = scmp.ge.s32.totalorder %s255, 1
                %s260 = sphi %s249, %s249
                %s261 = sphi %s246, %s246
              $region54: #{tpu_custom_call.1} parent=50 // loop_header_branch
                %258 = sbr.rel (%p256) target = $region58
              $region55: #{tpu_custom_call.1} parent=50 // loop_body
                %v262 = vld [vmem:[%s260] sm:$0xff]
                %263 = vst [vmem:[%s261] sm:$0xff] %v262
                %v264 = vld [vmem:[%s260 + $0x8] sm:$0xff]
                %265 = vst [vmem:[%s261 + $0x8] sm:$0xff] %v264
                %v266 = vld [vmem:[%s260 + $0x20] sm:$0xff]
                %267 = vst [vmem:[%s261 + $0x10] sm:$0xff] %v266
                %v268 = vld [vmem:[%s260 + $0x28] sm:$0xff]
                %269 = vst [vmem:[%s261 + $0x18] sm:$0xff] %v268
              $region56: #{tpu_custom_call.1} parent=50 // loop_footer
                %s259 = sadd.s32 1, %s255
              $region57: #{tpu_custom_call.1} parent=50 // loop_footer_branch
                %254 = sbr.rel target = $region53
              $region58: #{tpu_custom_call.1} parent=50 // loop_exit
                _
            $region51: #{tpu_custom_call.1} parent=46 // pred_fallthru
              _
            // Predicated region
            $region59: #{tpu_custom_call.1} parent=46 // pred_check
              _
            $region60: #{tpu_custom_call.1} parent=46 // pred_check_branch
              %271 = sbr.rel target = $region62
            $region61: #{tpu_custom_call.1} parent=46 // pred_region
              _
            $region62: #{tpu_custom_call.1} parent=46 // pred_fallthru
              _
          $region47: #{tpu_custom_call.1} parent=42 // pred_fallthru
            _
          %272 = vnop
        $region43: #{tpu_custom_call.1} parent=15 // pred_fallthru
          _
        // Predicated region
        $region63: #{tpu_custom_call.1} parent=15 // pred_check
          %p273 = pneg %p82
        $region64: #{tpu_custom_call.1} parent=15 // pred_check_branch
          %275 = sbr.rel (%p273) target = $region66
        $region65: #{tpu_custom_call.1} parent=15 // pred_region
          %s276 = smul.u32 2, %s10
          %p277 = scmp.lt.s32.totalorder %s276, 3
          %s278 = scalar_select %p277, %s276, 3
          %s279 = scalar_lea.vmem %s2, %s278
          %s280 = smul.u32 2, %s10
        $region66: #{tpu_custom_call.1} parent=15 // pred_fallthru
          _
        // Predicated region
        $region67: #{tpu_custom_call.1} parent=15 // pred_check
          %p281 = pneg %p108
        $region68: #{tpu_custom_call.1} parent=15 // pred_check_branch
          %283 = sbr.rel (%p281) target = $region70
        $region69: #{tpu_custom_call.1} parent=15 // pred_region
          %s284 = smul.u32 2, %s10
          %p285 = scmp.lt.s32.totalorder %s284, 3
          %s286 = scalar_select %p285, %s284, 3
          %s287 = scalar_lea.vmem %s3, %s286
          %s288 = smul.u32 2, %s10
        $region70: #{tpu_custom_call.1} parent=15 // pred_fallthru
          _
      $region16: #{tpu_custom_call.1} parent=5 // pred_fallthru
        _
      %p289 = scmp.le.s32.totalorder 1, %s10
      %p290 = scmp.lt.s32.totalorder %s10, 3
      %p291 = pnand %p289, %p290
      %p292 = pneg %p291
      // Predicated region
      $region71: #{tpu_custom_call.1} parent=5 // pred_check
        _
      $region72: #{tpu_custom_call.1} parent=5 // pred_check_branch
        %294 = sbr.rel (%p291) target = $region74
      $region73: #{tpu_custom_call.1} parent=5 // pred_region
        %s295 = ssub.s32 %s10, 1
        %s296 = sand.u32 %s23, 1
        %s297 = sand.u32 %s23, 1
        %s298 = smul.addr %s297, 224
        %s299 = scalar_lea.vmem [#allocation3], %s298
        // Predicated region
        $region75: #{tpu_custom_call.1} parent=73 // pred_check
          %p300 = pneg %p36
        $region76: #{tpu_custom_call.1} parent=73 // pred_check_branch
          %302 = sbr.rel (%p300) target = $region78
        $region77: #{tpu_custom_call.1} parent=73 // pred_region
          _
        $region78: #{tpu_custom_call.1} parent=73 // pred_fallthru
          _
        %s303 = sand.u32 %s49, 1
        %s304 = sand.u32 %s49, 1
        %s305 = smul.addr %s304, 32
        %s306 = scalar_lea.vmem [#allocation4], %s305
        // Predicated region
        $region79: #{tpu_custom_call.1} parent=73 // pred_check
          %p307 = pneg %p62
        $region80: #{tpu_custom_call.1} parent=73 // pred_check_branch
          %309 = sbr.rel (%p307) target = $region82
        $region81: #{tpu_custom_call.1} parent=73 // pred_region
          _
        $region82: #{tpu_custom_call.1} parent=73 // pred_fallthru
          _
        %s310 = sand.u32 %s23, 1
        %s311 = sand.u32 %s23, 1
        %s312 = smul.addr %s311, 224
        %s313 = scalar_lea.vmem [#allocation3], %s312
        %p314 = pneg %p36
        %p315 = pneg %p33
        %s316 = sand.u32 %s49, 1
        %s317 = sand.u32 %s49, 1
        %s318 = smul.addr %s317, 32
        %s319 = scalar_lea.vmem [#allocation4], %s318
        %p320 = pneg %p62
        %p321 = pneg %p59
        %s322 = smul.u32 2, %s15
        %p323 = scmp.lt.s32.totalorder %s322, 3
        %s324 = scalar_select %p323, %s322, 3
        %s325 = scalar_lea.vmem %s2, %s324
        %p326 = pneg %p88
        %p327 = pneg %p85
        %s328 = smul.u32 2, %s15
        %p329 = scmp.lt.s32.totalorder %s328, 3
        %s330 = scalar_select %p329, %s328, 3
        %s331 = scalar_lea.vmem %s3, %s330
        %p332 = pneg %p114
        %p333 = pneg %p111
        %p334 = pneg %p140
        %p335 = pneg %p137
        %s336 = sand.u32 %s127, 1
        %s337 = sand.u32 %s127, 1
        %s338 = smul.addr %s337, 224
        %s339 = scalar_lea.vmem [#allocation5], %s338
        %s340 = smul.u32 2, %s15
        %s341 = smul.u32 2, %s15
        %s342 = smul.u32 2, %s15
        %p343 = scmp.lt.s32.totalorder %s342, 3
        %s344 = scalar_select %p343, %s342, 3
        %s345 = scalar_lea.vmem %s2, %s344
        %s346 = smul.u32 2, %s15
        %s347 = smul.u32 2, %s15
        %p348 = scmp.lt.s32.totalorder %s347, 3
        %s349 = scalar_select %p348, %s347, 3
        %s350 = scalar_lea.vmem %s3, %s349
        %s351 = smul.u32 2, %s15
        %s352 = smul.u32 2, %s15
        %353 = vst [vmem:[#allocation2] sm:$0xff] 0.0
        %354 = vst [vmem:[#allocation2 + $0x8] sm:$0xff] 0.0
        %355 = vst [vmem:[#allocation2 + $0x10] sm:$0x1] 0.0
        %356 = vst [vmem:[#allocation2 + $0x18] sm:$0x1] 0.0
        %357 = vst [vmem:[#allocation2 + $0x20] sm:$0xff] 0.0
        %358 = vst [vmem:[#allocation2 + $0x28] sm:$0xff] 0.0
        %359 = vst [vmem:[#allocation2 + $0x30] sm:$0x1] 0.0
        %360 = vst [vmem:[#allocation2 + $0x38] sm:$0x1] 0.0
        %361 = vst [vmem:[#allocation2 + $0x40] sm:$0xff] 0.0
        %362 = vst [vmem:[#allocation2 + $0x48] sm:$0xff] 0.0
        %363 = vst [vmem:[#allocation2 + $0x50] sm:$0x1] 0.0
        %364 = vst [vmem:[#allocation2 + $0x58] sm:$0x1] 0.0
        %365 = vst [vmem:[#allocation2 + $0x60] sm:$0xff] 0.0
        %366 = vst [vmem:[#allocation2 + $0x68] sm:$0xff] 0.0
        %367 = vst [vmem:[#allocation2 + $0x70] sm:$0x1] 0.0
        %368 = vst [vmem:[#allocation2 + $0x78] sm:$0x1] 0.0
        %369 = vst [vmem:[#allocation2 + $0x80] sm:$0xff] 0.0
        %370 = vst [vmem:[#allocation2 + $0x88] sm:$0xff] 0.0
        %371 = vst [vmem:[#allocation2 + $0x90] sm:$0x1] 0.0
        %372 = vst [vmem:[#allocation2 + $0x98] sm:$0x1] 0.0
        %373 = vst [vmem:[#allocation2 + $0xa0] sm:$0xff] 0.0
        %374 = vst [vmem:[#allocation2 + $0xa8] sm:$0xff] 0.0
        %375 = vst [vmem:[#allocation2 + $0xb0] sm:$0x1] 0.0
        %376 = vst [vmem:[#allocation2 + $0xb8] sm:$0x1] 0.0
        %377 = vst [vmem:[#allocation2 + $0xc0] sm:$0xff] 0.0
        %378 = vst [vmem:[#allocation2 + $0xc8] sm:$0xff] 0.0
        %379 = vst [vmem:[#allocation2 + $0xd0] sm:$0x1] 0.0
        %380 = vst [vmem:[#allocation2 + $0xd8] sm:$0x1] 0.0
        %381 = vst [vmem:[#allocation2 + $0xe0] sm:$0xff] 0.0
        %382 = vst [vmem:[#allocation2 + $0xe8] sm:$0xff] 0.0
        %383 = vst [vmem:[#allocation2 + $0xf0] sm:$0x1] 0.0
        %384 = vst [vmem:[#allocation2 + $0xf8] sm:$0x1] 0.0
        %385 = vst [vmem:[#allocation2 + $0x100] sm:$0xff] 0.0
        %386 = vst [vmem:[#allocation2 + $0x108] sm:$0xff] 0.0
        %387 = vst [vmem:[#allocation2 + $0x110] sm:$0x1] 0.0
        %388 = vst [vmem:[#allocation2 + $0x118] sm:$0x1] 0.0
        %389 = vst [vmem:[#allocation2 + $0x120] sm:$0xff] 0.0
        %390 = vst [vmem:[#allocation2 + $0x128] sm:$0xff] 0.0
        %391 = vst [vmem:[#allocation2 + $0x130] sm:$0x1] 0.0
        %392 = vst [vmem:[#allocation2 + $0x138] sm:$0x1] 0.0
        %393 = vst [vmem:[#allocation2 + $0x140] sm:$0xff] 0.0
        %394 = vst [vmem:[#allocation2 + $0x148] sm:$0xff] 0.0
        %395 = vst [vmem:[#allocation2 + $0x150] sm:$0x1] 0.0
        %396 = vst [vmem:[#allocation2 + $0x158] sm:$0x1] 0.0
        %397 = vst [vmem:[#allocation2 + $0x160] sm:$0xff] 0.0
        %398 = vst [vmem:[#allocation2 + $0x168] sm:$0xff] 0.0
        %399 = vst [vmem:[#allocation2 + $0x170] sm:$0x1] 0.0
        %400 = vst [vmem:[#allocation2 + $0x178] sm:$0x1] 0.0
        %401 = vst [vmem:[#allocation2 + $0x180] sm:$0xff] 0.0
        %402 = vst [vmem:[#allocation2 + $0x188] sm:$0xff] 0.0
        %403 = vst [vmem:[#allocation2 + $0x190] sm:$0x1] 0.0
        %404 = vst [vmem:[#allocation2 + $0x198] sm:$0x1] 0.0
        %405 = vst [vmem:[#allocation2 + $0x1a0] sm:$0xff] 0.0
        %406 = vst [vmem:[#allocation2 + $0x1a8] sm:$0xff] 0.0
        %407 = vst [vmem:[#allocation2 + $0x1b0] sm:$0x1] 0.0
        %408 = vst [vmem:[#allocation2 + $0x1b8] sm:$0x1] 0.0
        %409 = vst [vmem:[#allocation2 + $0x1c0] sm:$0xff] 0.0
        %410 = vst [vmem:[#allocation2 + $0x1c8] sm:$0xff] 0.0
        %411 = vst [vmem:[#allocation2 + $0x1d0] sm:$0x1] 0.0
        %412 = vst [vmem:[#allocation2 + $0x1d8] sm:$0x1] 0.0
        %413 = vst [vmem:[#allocation2 + $0x1e0] sm:$0xff] 0.0
        %414 = vst [vmem:[#allocation2 + $0x1e8] sm:$0xff] 0.0
        %415 = vst [vmem:[#allocation2 + $0x1f0] sm:$0x1] 0.0
        %416 = vst [vmem:[#allocation2 + $0x1f8] sm:$0x1] 0.0
        %417 = vst [vmem:[#allocation2 + $0x200] sm:$0xff] 0.0
        %418 = vst [vmem:[#allocation2 + $0x208] sm:$0xff] 0.0
        %419 = vst [vmem:[#allocation2 + $0x210] sm:$0x1] 0.0
        %420 = vst [vmem:[#allocation2 + $0x218] sm:$0x1] 0.0
        %421 = vst [vmem:[#allocation2 + $0x220] sm:$0xff] 0.0
        %422 = vst [vmem:[#allocation2 + $0x228] sm:$0xff] 0.0
        %423 = vst [vmem:[#allocation2 + $0x230] sm:$0x1] 0.0
        %424 = vst [vmem:[#allocation2 + $0x238] sm:$0x1] 0.0
        %v425 = vld [vmem:[%s299] sm:$0x7f]
        %v426 = vld [vmem:[%s299 + $0x8] sm:$0x7f]
        %v427 = vld [vmem:[%s299 + $0x10] sm:$0x7f]
        %v428 = vld [vmem:[%s299 + $0x18] sm:$0x7f]
        %v429 = vld [vmem:[%s299 + $0x20] sm:$0x7f]
        %v430 = vld [vmem:[%s299 + $0x28] sm:$0x7f]
        %v431 = vld [vmem:[%s299 + $0x30] sm:$0x7f]
        %v432 = vld [vmem:[%s299 + $0x38] sm:$0x7f]
        %v433 = vld [vmem:[%s299 + $0x40] sm:$0x7f]
        %v434 = vld [vmem:[%s299 + $0x48] sm:$0x7f]
        %v435 = vld [vmem:[%s299 + $0x50] sm:$0x7f]
        %v436 = vld [vmem:[%s299 + $0x58] sm:$0x7f]
        %v437 = vld [vmem:[%s299 + $0x60] sm:$0x7f]
        %v438 = vld [vmem:[%s299 + $0x68] sm:$0x7f]
        %v439 = vld [vmem:[%s299 + $0x70] sm:$0x7f]
        %v440 = vld [vmem:[%s299 + $0x78] sm:$0x7f]
        %v441 = vld [vmem:[%s299 + $0x80] sm:$0x7f]
        %v442 = vld [vmem:[%s299 + $0x88] sm:$0x7f]
        %v443 = vld [vmem:[%s299 + $0x90] sm:$0x7f]
        %v444 = vld [vmem:[%s299 + $0x98] sm:$0x7f]
        %v445 = vld [vmem:[%s299 + $0xa0] sm:$0x7f]
        %v446 = vld [vmem:[%s299 + $0xa8] sm:$0x7f]
        %v447 = vld [vmem:[%s299 + $0xb0] sm:$0x7f]
        %v448 = vld [vmem:[%s299 + $0xb8] sm:$0x7f]
        %v449 = vld [vmem:[%s299 + $0xc0] sm:$0x7f]
        %v450 = vld [vmem:[%s299 + $0xc8] sm:$0x7f]
        %v451 = vld [vmem:[%s299 + $0xd0] sm:$0x7f]
        %v452 = vld [vmem:[%s299 + $0xd8] sm:$0x7f]
        %v481 = vrot.slane %v425, 7
        %v482 = vrot.slane %v426, 7
        %v483 = vrot.slane %v427, 7
        %v484 = vrot.slane %v428, 7
        %v485 = vrot.slane %v429, 7
        %v486 = vrot.slane %v430, 7
        %v487 = vrot.slane %v431, 7
        %v488 = vrot.slane %v432, 7
        %v489 = vrot.slane %v433, 7
        %v490 = vrot.slane %v434, 7
        %v491 = vrot.slane %v435, 7
        %v492 = vrot.slane %v436, 7
        %v493 = vrot.slane %v437, 7
        %v494 = vrot.slane %v438, 7
        %v495 = vrot.slane %v439, 7
        %v496 = vrot.slane %v440, 7
        %v497 = vrot.slane %v441, 7
        %v498 = vrot.slane %v442, 7
        %v499 = vrot.slane %v443, 7
        %v500 = vrot.slane %v444, 7
        %v501 = vrot.slane %v445, 7
        %v502 = vrot.slane %v446, 7
        %v503 = vrot.slane %v447, 7
        %v504 = vrot.slane %v448, 7
        %v505 = vrot.slane %v449, 7
        %v506 = vrot.slane %v450, 7
        %v507 = vrot.slane %v451, 7
        %v508 = vrot.slane %v452, 7
        %s537 = scalar_lea.vmem [#allocation2], 32
        %538 = vst [vmem:[%s537] sm:$0xfe] %v481
        %539 = vst [vmem:[%s537 + $0x8] sm:$0xfe] %v482
        %540 = vst [vmem:[%s537 + $0x20] sm:$0xfe] %v483
        %541 = vst [vmem:[%s537 + $0x28] sm:$0xfe] %v484
        %542 = vst [vmem:[%s537 + $0x40] sm:$0xfe] %v485
        %543 = vst [vmem:[%s537 + $0x48] sm:$0xfe] %v486
        %544 = vst [vmem:[%s537 + $0x60] sm:$0xfe] %v487
        %545 = vst [vmem:[%s537 + $0x68] sm:$0xfe] %v488
        %546 = vst [vmem:[%s537 + $0x80] sm:$0xfe] %v489
        %547 = vst [vmem:[%s537 + $0x88] sm:$0xfe] %v490
        %548 = vst [vmem:[%s537 + $0xa0] sm:$0xfe] %v491
        %549 = vst [vmem:[%s537 + $0xa8] sm:$0xfe] %v492
        %550 = vst [vmem:[%s537 + $0xc0] sm:$0xfe] %v493
        %551 = vst [vmem:[%s537 + $0xc8] sm:$0xfe] %v494
        %552 = vst [vmem:[%s537 + $0x120] sm:$0xfe] %v495
        %553 = vst [vmem:[%s537 + $0x128] sm:$0xfe] %v496
        %554 = vst [vmem:[%s537 + $0x140] sm:$0xfe] %v497
        %555 = vst [vmem:[%s537 + $0x148] sm:$0xfe] %v498
        %556 = vst [vmem:[%s537 + $0x160] sm:$0xfe] %v499
        %557 = vst [vmem:[%s537 + $0x168] sm:$0xfe] %v500
        %558 = vst [vmem:[%s537 + $0x180] sm:$0xfe] %v501
        %559 = vst [vmem:[%s537 + $0x188] sm:$0xfe] %v502
        %560 = vst [vmem:[%s537 + $0x1a0] sm:$0xfe] %v503
        %561 = vst [vmem:[%s537 + $0x1a8] sm:$0xfe] %v504
        %562 = vst [vmem:[%s537 + $0x1c0] sm:$0xfe] %v505
        %563 = vst [vmem:[%s537 + $0x1c8] sm:$0xfe] %v506
        %564 = vst [vmem:[%s537 + $0x1e0] sm:$0xfe] %v507
        %565 = vst [vmem:[%s537 + $0x1e8] sm:$0xfe] %v508
        %v566 = vld [vmem:[#allocation2] sm:$0x7f]
        %v567 = vld [vmem:[#allocation2 + $0x8] sm:$0x7f]
        %v568 = vld [vmem:[#allocation2 + $0x20] sm:$0x7f]
        %v569 = vld [vmem:[#allocation2 + $0x28] sm:$0x7f]
        %v570 = vld [vmem:[#allocation2 + $0x40] sm:$0x7f]
        %v571 = vld [vmem:[#allocation2 + $0x48] sm:$0x7f]
        %v572 = vld [vmem:[#allocation2 + $0x60] sm:$0x7f]
        %v573 = vld [vmem:[#allocation2 + $0x68] sm:$0x7f]
        %v574 = vld [vmem:[#allocation2 + $0x80] sm:$0x7f]
        %v575 = vld [vmem:[#allocation2 + $0x88] sm:$0x7f]
        %v576 = vld [vmem:[#allocation2 + $0xa0] sm:$0x7f]
        %v577 = vld [vmem:[#allocation2 + $0xa8] sm:$0x7f]
        %v578 = vld [vmem:[#allocation2 + $0xc0] sm:$0x7f]
        %v579 = vld [vmem:[#allocation2 + $0xc8] sm:$0x7f]
        %v580 = vld [vmem:[#allocation2 + $0xe0] sm:$0x7f]
        %v581 = vld [vmem:[#allocation2 + $0xe8] sm:$0x7f]
        %v582 = vld [vmem:[#allocation2 + $0x100] sm:$0x7f]
        %v583 = vld [vmem:[#allocation2 + $0x108] sm:$0x7f]
        %v584 = vld [vmem:[#allocation2 + $0x120] sm:$0x7f]
        %v585 = vld [vmem:[#allocation2 + $0x128] sm:$0x7f]
        %v586 = vld [vmem:[#allocation2 + $0x140] sm:$0x7f]
        %v587 = vld [vmem:[#allocation2 + $0x148] sm:$0x7f]
        %v588 = vld [vmem:[#allocation2 + $0x160] sm:$0x7f]
        %v589 = vld [vmem:[#allocation2 + $0x168] sm:$0x7f]
        %v590 = vld [vmem:[#allocation2 + $0x180] sm:$0x7f]
        %v591 = vld [vmem:[#allocation2 + $0x188] sm:$0x7f]
        %v592 = vld [vmem:[#allocation2 + $0x1a0] sm:$0x7f]
        %v593 = vld [vmem:[#allocation2 + $0x1a8] sm:$0x7f]
        %v594 = vld [vmem:[#allocation2 + $0x1c0] sm:$0x7f]
        %v595 = vld [vmem:[#allocation2 + $0x1c8] sm:$0x7f]
        %v596 = vld [vmem:[#allocation2 + $0x1e0] sm:$0x7f]
        %v597 = vld [vmem:[#allocation2 + $0x1e8] sm:$0x7f]
        %v598 = vld [vmem:[#allocation2 + $0x200] sm:$0x7f]
        %v599 = vld [vmem:[#allocation2 + $0x208] sm:$0x7f]
        %v600 = vld [vmem:[#allocation2 + $0x220] sm:$0x7f]
        %v601 = vld [vmem:[#allocation2 + $0x228] sm:$0x7f]
        %v602 = vld [vmem:[%s306] ss:$8 sm:$0x3]
        %v604 = vlaneseq
        %v605 = vshrl.u32 %v604, 7
        %v606 = vsub.s32 0, %v605
        %v607 = vrot.slane %v602, %v606
        %v608 = vlaneseq
        %v609 = vshrl.u32 %v608, 7
        %v610 = vsub.s32 1, %v609
        %v611 = vrot.slane %v602, %v610
        %v614 = vmul.f32 %v566, %v607
        %v615 = vmul.f32 %v567, %v611
        %v616 = vmul.f32 %v568, %v607
        %v617 = vmul.f32 %v569, %v611
        %v618 = vmul.f32 %v570, %v607
        %v619 = vmul.f32 %v571, %v611
        %v620 = vmul.f32 %v572, %v607
        %v621 = vmul.f32 %v573, %v611
        %v622 = vmul.f32 %v574, %v607
        %v623 = vmul.f32 %v575, %v611
        %v624 = vmul.f32 %v576, %v607
        %v625 = vmul.f32 %v577, %v611
        %v626 = vmul.f32 %v578, %v607
        %v627 = vmul.f32 %v579, %v611
        %v628 = vmul.f32 %v584, %v607
        %v629 = vmul.f32 %v585, %v611
        %v630 = vmul.f32 %v586, %v607
        %v631 = vmul.f32 %v587, %v611
        %v632 = vmul.f32 %v588, %v607
        %v633 = vmul.f32 %v589, %v611
        %v634 = vmul.f32 %v590, %v607
        %v635 = vmul.f32 %v591, %v611
        %v636 = vmul.f32 %v592, %v607
        %v637 = vmul.f32 %v593, %v611
        %v638 = vmul.f32 %v594, %v607
        %v639 = vmul.f32 %v595, %v611
        %v640 = vmul.f32 %v596, %v607
        %v641 = vmul.f32 %v597, %v611
        %v642 = vadd.f32 %v614, 0.0
        %v643 = vadd.f32 %v615, 0.0
        %v644 = vadd.f32 %v616, 0.0
        %v645 = vadd.f32 %v617, 0.0
        %v646 = vadd.f32 %v618, 0.0
        %v647 = vadd.f32 %v619, 0.0
        %v648 = vadd.f32 %v620, 0.0
        %v649 = vadd.f32 %v621, 0.0
        %v650 = vadd.f32 %v622, 0.0
        %v651 = vadd.f32 %v623, 0.0
        %v652 = vadd.f32 %v624, 0.0
        %v653 = vadd.f32 %v625, 0.0
        %v654 = vadd.f32 %v626, 0.0
        %v655 = vadd.f32 %v627, 0.0
        %v656 = vadd.f32 %v628, 0.0
        %v657 = vadd.f32 %v629, 0.0
        %v658 = vadd.f32 %v630, 0.0
        %v659 = vadd.f32 %v631, 0.0
        %v660 = vadd.f32 %v632, 0.0
        %v661 = vadd.f32 %v633, 0.0
        %v662 = vadd.f32 %v634, 0.0
        %v663 = vadd.f32 %v635, 0.0
        %v664 = vadd.f32 %v636, 0.0
        %v665 = vadd.f32 %v637, 0.0
        %v666 = vadd.f32 %v638, 0.0
        %v667 = vadd.f32 %v639, 0.0
        %v668 = vadd.f32 %v640, 0.0
        %v669 = vadd.f32 %v641, 0.0
        %s670 = scalar_lea.vmem %s306, 3 [#allocation4]
        %v671 = vld [vmem:[%s670] ss:$8 sm:$0x3]
        %v673 = vlaneseq
        %v674 = vshrl.u32 %v673, 7
        %v675 = vsub.s32 0, %v674
        %v676 = vrot.slane %v671, %v675
        %v677 = vlaneseq
        %v678 = vshrl.u32 %v677, 7
        %v679 = vsub.s32 1, %v678
        %v680 = vrot.slane %v671, %v679
        %v683 = vmul.f32 %v568, %v676
        %v684 = vmul.f32 %v569, %v680
        %v685 = vmul.f32 %v570, %v676
        %v686 = vmul.f32 %v571, %v680
        %v687 = vmul.f32 %v572, %v676
        %v688 = vmul.f32 %v573, %v680
        %v689 = vmul.f32 %v574, %v676
        %v690 = vmul.f32 %v575, %v680
        %v691 = vmul.f32 %v576, %v676
        %v692 = vmul.f32 %v577, %v680
        %v693 = vmul.f32 %v578, %v676
        %v694 = vmul.f32 %v579, %v680
        %v695 = vmul.f32 %v580, %v676
        %v696 = vmul.f32 %v581, %v680
        %v697 = vmul.f32 %v586, %v676
        %v698 = vmul.f32 %v587, %v680
        %v699 = vmul.f32 %v588, %v676
        %v700 = vmul.f32 %v589, %v680
        %v701 = vmul.f32 %v590, %v676
        %v702 = vmul.f32 %v591, %v680
        %v703 = vmul.f32 %v592, %v676
        %v704 = vmul.f32 %v593, %v680
        %v705 = vmul.f32 %v594, %v676
        %v706 = vmul.f32 %v595, %v680
        %v707 = vmul.f32 %v596, %v676
        %v708 = vmul.f32 %v597, %v680
        %v709 = vmul.f32 %v598, %v676
        %v710 = vmul.f32 %v599, %v680
        %v711 = vadd.f32 %v642, %v683
        %v712 = vadd.f32 %v643, %v684
        %v713 = vadd.f32 %v644, %v685
        %v714 = vadd.f32 %v645, %v686
        %v715 = vadd.f32 %v646, %v687
        %v716 = vadd.f32 %v647, %v688
        %v717 = vadd.f32 %v648, %v689
        %v718 = vadd.f32 %v649, %v690
        %v719 = vadd.f32 %v650, %v691
        %v720 = vadd.f32 %v651, %v692
        %v721 = vadd.f32 %v652, %v693
        %v722 = vadd.f32 %v653, %v694
        %v723 = vadd.f32 %v654, %v695
        %v724 = vadd.f32 %v655, %v696
        %v725 = vadd.f32 %v656, %v697
        %v726 = vadd.f32 %v657, %v698
        %v727 = vadd.f32 %v658, %v699
        %v728 = vadd.f32 %v659, %v700
        %v729 = vadd.f32 %v660, %v701
        %v730 = vadd.f32 %v661, %v702
        %v731 = vadd.f32 %v662, %v703
        %v732 = vadd.f32 %v663, %v704
        %v733 = vadd.f32 %v664, %v705
        %v734 = vadd.f32 %v665, %v706
        %v735 = vadd.f32 %v666, %v707
        %v736 = vadd.f32 %v667, %v708
        %v737 = vadd.f32 %v668, %v709
        %v738 = vadd.f32 %v669, %v710
        %s739 = scalar_lea.vmem %s306, 6 [#allocation4]
        %v740 = vld [vmem:[%s739] ss:$8 sm:$0x3]
        %v742 = vlaneseq
        %v743 = vshrl.u32 %v742, 7
        %v744 = vsub.s32 0, %v743
        %v745 = vrot.slane %v740, %v744
        %v746 = vlaneseq
        %v747 = vshrl.u32 %v746, 7
        %v748 = vsub.s32 1, %v747
        %v749 = vrot.slane %v740, %v748
        %v752 = vmul.f32 %v570, %v745
        %v753 = vmul.f32 %v571, %v749
        %v754 = vmul.f32 %v572, %v745
        %v755 = vmul.f32 %v573, %v749
        %v756 = vmul.f32 %v574, %v745
        %v757 = vmul.f32 %v575, %v749
        %v758 = vmul.f32 %v576, %v745
        %v759 = vmul.f32 %v577, %v749
        %v760 = vmul.f32 %v578, %v745
        %v761 = vmul.f32 %v579, %v749
        %v762 = vmul.f32 %v580, %v745
        %v763 = vmul.f32 %v581, %v749
        %v764 = vmul.f32 %v582, %v745
        %v765 = vmul.f32 %v583, %v749
        %v766 = vmul.f32 %v588, %v745
        %v767 = vmul.f32 %v589, %v749
        %v768 = vmul.f32 %v590, %v745
        %v769 = vmul.f32 %v591, %v749
        %v770 = vmul.f32 %v592, %v745
        %v771 = vmul.f32 %v593, %v749
        %v772 = vmul.f32 %v594, %v745
        %v773 = vmul.f32 %v595, %v749
        %v774 = vmul.f32 %v596, %v745
        %v775 = vmul.f32 %v597, %v749
        %v776 = vmul.f32 %v598, %v745
        %v777 = vmul.f32 %v599, %v749
        %v778 = vmul.f32 %v600, %v745
        %v779 = vmul.f32 %v601, %v749
        %v780 = vadd.f32 %v711, %v752
        %v781 = vadd.f32 %v712, %v753
        %v782 = vadd.f32 %v713, %v754
        %v783 = vadd.f32 %v714, %v755
        %v784 = vadd.f32 %v715, %v756
        %v785 = vadd.f32 %v716, %v757
        %v786 = vadd.f32 %v717, %v758
        %v787 = vadd.f32 %v718, %v759
        %v788 = vadd.f32 %v719, %v760
        %v789 = vadd.f32 %v720, %v761
        %v790 = vadd.f32 %v721, %v762
        %v791 = vadd.f32 %v722, %v763
        %v792 = vadd.f32 %v723, %v764
        %v793 = vadd.f32 %v724, %v765
        %v794 = vadd.f32 %v725, %v766
        %v795 = vadd.f32 %v726, %v767
        %v796 = vadd.f32 %v727, %v768
        %v797 = vadd.f32 %v728, %v769
        %v798 = vadd.f32 %v729, %v770
        %v799 = vadd.f32 %v730, %v771
        %v800 = vadd.f32 %v731, %v772
        %v801 = vadd.f32 %v732, %v773
        %v802 = vadd.f32 %v733, %v774
        %v803 = vadd.f32 %v734, %v775
        %v804 = vadd.f32 %v735, %v776
        %v805 = vadd.f32 %v736, %v777
        %v806 = vadd.f32 %v737, %v778
        %v807 = vadd.f32 %v738, %v779
        %v808 = vld [vmem:[#allocation2] sm:$0xfe]
        %v809 = vld [vmem:[#allocation2 + $0x8] sm:$0xfe]
        %v810 = vld [vmem:[#allocation2 + $0x20] sm:$0xfe]
        %v811 = vld [vmem:[#allocation2 + $0x28] sm:$0xfe]
        %v812 = vld [vmem:[#allocation2 + $0x40] sm:$0xfe]
        %v813 = vld [vmem:[#allocation2 + $0x48] sm:$0xfe]
        %v814 = vld [vmem:[#allocation2 + $0x60] sm:$0xfe]
        %v815 = vld [vmem:[#allocation2 + $0x68] sm:$0xfe]
        %v816 = vld [vmem:[#allocation2 + $0x80] sm:$0xfe]
        %v817 = vld [vmem:[#allocation2 + $0x88] sm:$0xfe]
        %v818 = vld [vmem:[#allocation2 + $0xa0] sm:$0xfe]
        %v819 = vld [vmem:[#allocation2 + $0xa8] sm:$0xfe]
        %v820 = vld [vmem:[#allocation2 + $0xc0] sm:$0xfe]
        %v821 = vld [vmem:[#allocation2 + $0xc8] sm:$0xfe]
        %v822 = vld [vmem:[#allocation2 + $0xe0] sm:$0xfe]
        %v823 = vld [vmem:[#allocation2 + $0xe8] sm:$0xfe]
        %v824 = vld [vmem:[#allocation2 + $0x100] sm:$0xfe]
        %v825 = vld [vmem:[#allocation2 + $0x108] sm:$0xfe]
        %v826 = vld [vmem:[#allocation2 + $0x120] sm:$0xfe]
        %v827 = vld [vmem:[#allocation2 + $0x128] sm:$0xfe]
        %v828 = vld [vmem:[#allocation2 + $0x140] sm:$0xfe]
        %v829 = vld [vmem:[#allocation2 + $0x148] sm:$0xfe]
        %v830 = vld [vmem:[#allocation2 + $0x160] sm:$0xfe]
        %v831 = vld [vmem:[#allocation2 + $0x168] sm:$0xfe]
        %v832 = vld [vmem:[#allocation2 + $0x180] sm:$0xfe]
        %v833 = vld [vmem:[#allocation2 + $0x188] sm:$0xfe]
        %v834 = vld [vmem:[#allocation2 + $0x1a0] sm:$0xfe]
        %v835 = vld [vmem:[#allocation2 + $0x1a8] sm:$0xfe]
        %v836 = vld [vmem:[#allocation2 + $0x1c0] sm:$0xfe]
        %v837 = vld [vmem:[#allocation2 + $0x1c8] sm:$0xfe]
        %v838 = vld [vmem:[#allocation2 + $0x1e0] sm:$0xfe]
        %v839 = vld [vmem:[#allocation2 + $0x1e8] sm:$0xfe]
        %v840 = vld [vmem:[#allocation2 + $0x200] sm:$0xfe]
        %v841 = vld [vmem:[#allocation2 + $0x208] sm:$0xfe]
        %v842 = vld [vmem:[#allocation2 + $0x220] sm:$0xfe]
        %v843 = vld [vmem:[#allocation2 + $0x228] sm:$0xfe]
        %s844 = scalar_lea.vmem %s306, 1 [#allocation4]
        %v845 = vld [vmem:[%s844] ss:$8 sm:$0x3]
        %v847 = vlaneseq
        %v848 = vshrl.u32 %v847, 7
        %v849 = vsub.s32 0, %v848
        %v850 = vrot.slane %v845, %v849
        %v851 = vlaneseq
        %v852 = vshrl.u32 %v851, 7
        %v853 = vsub.s32 1, %v852
        %v854 = vrot.slane %v845, %v853
        %v857 = vmul.f32 %v808, %v850
        %v858 = vmul.f32 %v809, %v854
        %v859 = vmul.f32 %v810, %v850
        %v860 = vmul.f32 %v811, %v854
        %v861 = vmul.f32 %v812, %v850
        %v862 = vmul.f32 %v813, %v854
        %v863 = vmul.f32 %v814, %v850
        %v864 = vmul.f32 %v815, %v854
        %v865 = vmul.f32 %v816, %v850
        %v866 = vmul.f32 %v817, %v854
        %v867 = vmul.f32 %v818, %v850
        %v868 = vmul.f32 %v819, %v854
        %v869 = vmul.f32 %v820, %v850
        %v870 = vmul.f32 %v821, %v854
        %v871 = vmul.f32 %v826, %v850
        %v872 = vmul.f32 %v827, %v854
        %v873 = vmul.f32 %v828, %v850
        %v874 = vmul.f32 %v829, %v854
        %v875 = vmul.f32 %v830, %v850
        %v876 = vmul.f32 %v831, %v854
        %v877 = vmul.f32 %v832, %v850
        %v878 = vmul.f32 %v833, %v854
        %v879 = vmul.f32 %v834, %v850
        %v880 = vmul.f32 %v835, %v854
        %v881 = vmul.f32 %v836, %v850
        %v882 = vmul.f32 %v837, %v854
        %v883 = vmul.f32 %v838, %v850
        %v884 = vmul.f32 %v839, %v854
        %v913 = vrot.slane %v857, 1
        %v914 = vrot.slane %v858, 1
        %v915 = vrot.slane %v859, 1
        %v916 = vrot.slane %v860, 1
        %v917 = vrot.slane %v861, 1
        %v918 = vrot.slane %v862, 1
        %v919 = vrot.slane %v863, 1
        %v920 = vrot.slane %v864, 1
        %v921 = vrot.slane %v865, 1
        %v922 = vrot.slane %v866, 1
        %v923 = vrot.slane %v867, 1
        %v924 = vrot.slane %v868, 1
        %v925 = vrot.slane %v869, 1
        %v926 = vrot.slane %v870, 1
        %v927 = vrot.slane %v871, 1
        %v928 = vrot.slane %v872, 1
        %v929 = vrot.slane %v873, 1
        %v930 = vrot.slane %v874, 1
        %v931 = vrot.slane %v875, 1
        %v932 = vrot.slane %v876, 1
        %v933 = vrot.slane %v877, 1
        %v934 = vrot.slane %v878, 1
        %v935 = vrot.slane %v879, 1
        %v936 = vrot.slane %v880, 1
        %v937 = vrot.slane %v881, 1
        %v938 = vrot.slane %v882, 1
        %v939 = vrot.slane %v883, 1
        %v940 = vrot.slane %v884, 1
        %v969 = vadd.f32 %v780, %v913
        %v970 = vadd.f32 %v781, %v914
        %v971 = vadd.f32 %v782, %v915
        %v972 = vadd.f32 %v783, %v916
        %v973 = vadd.f32 %v784, %v917
        %v974 = vadd.f32 %v785, %v918
        %v975 = vadd.f32 %v786, %v919
        %v976 = vadd.f32 %v787, %v920
        %v977 = vadd.f32 %v788, %v921
        %v978 = vadd.f32 %v789, %v922
        %v979 = vadd.f32 %v790, %v923
        %v980 = vadd.f32 %v791, %v924
        %v981 = vadd.f32 %v792, %v925
        %v982 = vadd.f32 %v793, %v926
        %v983 = vadd.f32 %v794, %v927
        %v984 = vadd.f32 %v795, %v928
        %v985 = vadd.f32 %v796, %v929
        %v986 = vadd.f32 %v797, %v930
        %v987 = vadd.f32 %v798, %v931
        %v988 = vadd.f32 %v799, %v932
        %v989 = vadd.f32 %v800, %v933
        %v990 = vadd.f32 %v801, %v934
        %v991 = vadd.f32 %v802, %v935
        %v992 = vadd.f32 %v803, %v936
        %v993 = vadd.f32 %v804, %v937
        %v994 = vadd.f32 %v805, %v938
        %v995 = vadd.f32 %v806, %v939
        %v996 = vadd.f32 %v807, %v940
        %s997 = scalar_lea.vmem %s306, 4 [#allocation4]
        %v998 = vld [vmem:[%s997] ss:$8 sm:$0x3]
        %v1000 = vlaneseq
        %v1001 = vshrl.u32 %v1000, 7
        %v1002 = vsub.s32 0, %v1001
        %v1003 = vrot.slane %v998, %v1002
        %v1004 = vlaneseq
        %v1005 = vshrl.u32 %v1004, 7
        %v1006 = vsub.s32 1, %v1005
        %v1007 = vrot.slane %v998, %v1006
        %v1010 = vmul.f32 %v810, %v1003
        %v1011 = vmul.f32 %v811, %v1007
        %v1012 = vmul.f32 %v812, %v1003
        %v1013 = vmul.f32 %v813, %v1007
        %v1014 = vmul.f32 %v814, %v1003
        %v1015 = vmul.f32 %v815, %v1007
        %v1016 = vmul.f32 %v816, %v1003
        %v1017 = vmul.f32 %v817, %v1007
        %v1018 = vmul.f32 %v818, %v1003
        %v1019 = vmul.f32 %v819, %v1007
        %v1020 = vmul.f32 %v820, %v1003
        %v1021 = vmul.f32 %v821, %v1007
        %v1022 = vmul.f32 %v822, %v1003
        %v1023 = vmul.f32 %v823, %v1007
        %v1024 = vmul.f32 %v828, %v1003
        %v1025 = vmul.f32 %v829, %v1007
        %v1026 = vmul.f32 %v830, %v1003
        %v1027 = vmul.f32 %v831, %v1007
        %v1028 = vmul.f32 %v832, %v1003
        %v1029 = vmul.f32 %v833, %v1007
        %v1030 = vmul.f32 %v834, %v1003
        %v1031 = vmul.f32 %v835, %v1007
        %v1032 = vmul.f32 %v836, %v1003
        %v1033 = vmul.f32 %v837, %v1007
        %v1034 = vmul.f32 %v838, %v1003
        %v1035 = vmul.f32 %v839, %v1007
        %v1036 = vmul.f32 %v840, %v1003
        %v1037 = vmul.f32 %v841, %v1007
        %v1066 = vrot.slane %v1010, 1
        %v1067 = vrot.slane %v1011, 1
        %v1068 = vrot.slane %v1012, 1
        %v1069 = vrot.slane %v1013, 1
        %v1070 = vrot.slane %v1014, 1
        %v1071 = vrot.slane %v1015, 1
        %v1072 = vrot.slane %v1016, 1
        %v1073 = vrot.slane %v1017, 1
        %v1074 = vrot.slane %v1018, 1
        %v1075 = vrot.slane %v1019, 1
        %v1076 = vrot.slane %v1020, 1
        %v1077 = vrot.slane %v1021, 1
        %v1078 = vrot.slane %v1022, 1
        %v1079 = vrot.slane %v1023, 1
        %v1080 = vrot.slane %v1024, 1
        %v1081 = vrot.slane %v1025, 1
        %v1082 = vrot.slane %v1026, 1
        %v1083 = vrot.slane %v1027, 1
        %v1084 = vrot.slane %v1028, 1
        %v1085 = vrot.slane %v1029, 1
        %v1086 = vrot.slane %v1030, 1
        %v1087 = vrot.slane %v1031, 1
        %v1088 = vrot.slane %v1032, 1
        %v1089 = vrot.slane %v1033, 1
        %v1090 = vrot.slane %v1034, 1
        %v1091 = vrot.slane %v1035, 1
        %v1092 = vrot.slane %v1036, 1
        %v1093 = vrot.slane %v1037, 1
        %v1122 = vadd.f32 %v969, %v1066
        %v1123 = vadd.f32 %v970, %v1067
        %v1124 = vadd.f32 %v971, %v1068
        %v1125 = vadd.f32 %v972, %v1069
        %v1126 = vadd.f32 %v973, %v1070
        %v1127 = vadd.f32 %v974, %v1071
        %v1128 = vadd.f32 %v975, %v1072
        %v1129 = vadd.f32 %v976, %v1073
        %v1130 = vadd.f32 %v977, %v1074
        %v1131 = vadd.f32 %v978, %v1075
        %v1132 = vadd.f32 %v979, %v1076
        %v1133 = vadd.f32 %v980, %v1077
        %v1134 = vadd.f32 %v981, %v1078
        %v1135 = vadd.f32 %v982, %v1079
        %v1136 = vadd.f32 %v983, %v1080
        %v1137 = vadd.f32 %v984, %v1081
        %v1138 = vadd.f32 %v985, %v1082
        %v1139 = vadd.f32 %v986, %v1083
        %v1140 = vadd.f32 %v987, %v1084
        %v1141 = vadd.f32 %v988, %v1085
        %v1142 = vadd.f32 %v989, %v1086
        %v1143 = vadd.f32 %v990, %v1087
        %v1144 = vadd.f32 %v991, %v1088
        %v1145 = vadd.f32 %v992, %v1089
        %v1146 = vadd.f32 %v993, %v1090
        %v1147 = vadd.f32 %v994, %v1091
        %v1148 = vadd.f32 %v995, %v1092
        %v1149 = vadd.f32 %v996, %v1093
        %s1150 = scalar_lea.vmem %s306, 7 [#allocation4]
        %v1151 = vld [vmem:[%s1150] ss:$8 sm:$0x3]
        %v1153 = vlaneseq
        %v1154 = vshrl.u32 %v1153, 7
        %v1155 = vsub.s32 0, %v1154
        %v1156 = vrot.slane %v1151, %v1155
        %v1157 = vlaneseq
        %v1158 = vshrl.u32 %v1157, 7
        %v1159 = vsub.s32 1, %v1158
        %v1160 = vrot.slane %v1151, %v1159
        %v1163 = vmul.f32 %v812, %v1156
        %v1164 = vmul.f32 %v813, %v1160
        %v1165 = vmul.f32 %v814, %v1156
        %v1166 = vmul.f32 %v815, %v1160
        %v1167 = vmul.f32 %v816, %v1156
        %v1168 = vmul.f32 %v817, %v1160
        %v1169 = vmul.f32 %v818, %v1156
        %v1170 = vmul.f32 %v819, %v1160
        %v1171 = vmul.f32 %v820, %v1156
        %v1172 = vmul.f32 %v821, %v1160
        %v1173 = vmul.f32 %v822, %v1156
        %v1174 = vmul.f32 %v823, %v1160
        %v1175 = vmul.f32 %v824, %v1156
        %v1176 = vmul.f32 %v825, %v1160
        %v1177 = vmul.f32 %v830, %v1156
        %v1178 = vmul.f32 %v831, %v1160
        %v1179 = vmul.f32 %v832, %v1156
        %v1180 = vmul.f32 %v833, %v1160
        %v1181 = vmul.f32 %v834, %v1156
        %v1182 = vmul.f32 %v835, %v1160
        %v1183 = vmul.f32 %v836, %v1156
        %v1184 = vmul.f32 %v837, %v1160
        %v1185 = vmul.f32 %v838, %v1156
        %v1186 = vmul.f32 %v839, %v1160
        %v1187 = vmul.f32 %v840, %v1156
        %v1188 = vmul.f32 %v841, %v1160
        %v1189 = vmul.f32 %v842, %v1156
        %v1190 = vmul.f32 %v843, %v1160
        %v1219 = vrot.slane %v1163, 1
        %v1220 = vrot.slane %v1164, 1
        %v1221 = vrot.slane %v1165, 1
        %v1222 = vrot.slane %v1166, 1
        %v1223 = vrot.slane %v1167, 1
        %v1224 = vrot.slane %v1168, 1
        %v1225 = vrot.slane %v1169, 1
        %v1226 = vrot.slane %v1170, 1
        %v1227 = vrot.slane %v1171, 1
        %v1228 = vrot.slane %v1172, 1
        %v1229 = vrot.slane %v1173, 1
        %v1230 = vrot.slane %v1174, 1
        %v1231 = vrot.slane %v1175, 1
        %v1232 = vrot.slane %v1176, 1
        %v1233 = vrot.slane %v1177, 1
        %v1234 = vrot.slane %v1178, 1
        %v1235 = vrot.slane %v1179, 1
        %v1236 = vrot.slane %v1180, 1
        %v1237 = vrot.slane %v1181, 1
        %v1238 = vrot.slane %v1182, 1
        %v1239 = vrot.slane %v1183, 1
        %v1240 = vrot.slane %v1184, 1
        %v1241 = vrot.slane %v1185, 1
        %v1242 = vrot.slane %v1186, 1
        %v1243 = vrot.slane %v1187, 1
        %v1244 = vrot.slane %v1188, 1
        %v1245 = vrot.slane %v1189, 1
        %v1246 = vrot.slane %v1190, 1
        %v1275 = vadd.f32 %v1122, %v1219
        %v1276 = vadd.f32 %v1123, %v1220
        %v1277 = vadd.f32 %v1124, %v1221
        %v1278 = vadd.f32 %v1125, %v1222
        %v1279 = vadd.f32 %v1126, %v1223
        %v1280 = vadd.f32 %v1127, %v1224
        %v1281 = vadd.f32 %v1128, %v1225
        %v1282 = vadd.f32 %v1129, %v1226
        %v1283 = vadd.f32 %v1130, %v1227
        %v1284 = vadd.f32 %v1131, %v1228
        %v1285 = vadd.f32 %v1132, %v1229
        %v1286 = vadd.f32 %v1133, %v1230
        %v1287 = vadd.f32 %v1134, %v1231
        %v1288 = vadd.f32 %v1135, %v1232
        %v1289 = vadd.f32 %v1136, %v1233
        %v1290 = vadd.f32 %v1137, %v1234
        %v1291 = vadd.f32 %v1138, %v1235
        %v1292 = vadd.f32 %v1139, %v1236
        %v1293 = vadd.f32 %v1140, %v1237
        %v1294 = vadd.f32 %v1141, %v1238
        %v1295 = vadd.f32 %v1142, %v1239
        %v1296 = vadd.f32 %v1143, %v1240
        %v1297 = vadd.f32 %v1144, %v1241
        %v1298 = vadd.f32 %v1145, %v1242
        %v1299 = vadd.f32 %v1146, %v1243
        %v1300 = vadd.f32 %v1147, %v1244
        %v1301 = vadd.f32 %v1148, %v1245
        %v1302 = vadd.f32 %v1149, %v1246
        %v1303 = vld [vmem:[#allocation2] sm:$0xfc]
        %v1304 = vld [vmem:[#allocation2 + $0x8] sm:$0xfc]
        %v1305 = vld [vmem:[#allocation2 + $0x10] sm:$0x1]
        %v1306 = vld [vmem:[#allocation2 + $0x18] sm:$0x1]
        %v1307 = vld [vmem:[#allocation2 + $0x20] sm:$0xfc]
        %v1308 = vld [vmem:[#allocation2 + $0x28] sm:$0xfc]
        %v1309 = vld [vmem:[#allocation2 + $0x30] sm:$0x1]
        %v1310 = vld [vmem:[#allocation2 + $0x38] sm:$0x1]
        %v1311 = vld [vmem:[#allocation2 + $0x40] sm:$0xfc]
        %v1312 = vld [vmem:[#allocation2 + $0x48] sm:$0xfc]
        %v1313 = vld [vmem:[#allocation2 + $0x50] sm:$0x1]
        %v1314 = vld [vmem:[#allocation2 + $0x58] sm:$0x1]
        %v1315 = vld [vmem:[#allocation2 + $0x60] sm:$0xfc]
        %v1316 = vld [vmem:[#allocation2 + $0x68] sm:$0xfc]
        %v1317 = vld [vmem:[#allocation2 + $0x70] sm:$0x1]
        %v1318 = vld [vmem:[#allocation2 + $0x78] sm:$0x1]
        %v1319 = vld [vmem:[#allocation2 + $0x80] sm:$0xfc]
        %v1320 = vld [vmem:[#allocation2 + $0x88] sm:$0xfc]
        %v1321 = vld [vmem:[#allocation2 + $0x90] sm:$0x1]
        %v1322 = vld [vmem:[#allocation2 + $0x98] sm:$0x1]
        %v1323 = vld [vmem:[#allocation2 + $0xa0] sm:$0xfc]
        %v1324 = vld [vmem:[#allocation2 + $0xa8] sm:$0xfc]
        %v1325 = vld [vmem:[#allocation2 + $0xb0] sm:$0x1]
        %v1326 = vld [vmem:[#allocation2 + $0xb8] sm:$0x1]
        %v1327 = vld [vmem:[#allocation2 + $0xc0] sm:$0xfc]
        %v1328 = vld [vmem:[#allocation2 + $0xc8] sm:$0xfc]
        %v1329 = vld [vmem:[#allocation2 + $0xd0] sm:$0x1]
        %v1330 = vld [vmem:[#allocation2 + $0xd8] sm:$0x1]
        %v1331 = vld [vmem:[#allocation2 + $0xe0] sm:$0xfc]
        %v1332 = vld [vmem:[#allocation2 + $0xe8] sm:$0xfc]
        %v1333 = vld [vmem:[#allocation2 + $0xf0] sm:$0x1]
        %v1334 = vld [vmem:[#allocation2 + $0xf8] sm:$0x1]
        %v1335 = vld [vmem:[#allocation2 + $0x100] sm:$0xfc]
        %v1336 = vld [vmem:[#allocation2 + $0x108] sm:$0xfc]
        %v1337 = vld [vmem:[#allocation2 + $0x110] sm:$0x1]
        %v1338 = vld [vmem:[#allocation2 + $0x118] sm:$0x1]
        %v1339 = vld [vmem:[#allocation2 + $0x120] sm:$0xfc]
        %v1340 = vld [vmem:[#allocation2 + $0x128] sm:$0xfc]
        %v1341 = vld [vmem:[#allocation2 + $0x130] sm:$0x1]
        %v1342 = vld [vmem:[#allocation2 + $0x138] sm:$0x1]
        %v1343 = vld [vmem:[#allocation2 + $0x140] sm:$0xfc]
        %v1344 = vld [vmem:[#allocation2 + $0x148] sm:$0xfc]
        %v1345 = vld [vmem:[#allocation2 + $0x150] sm:$0x1]
        %v1346 = vld [vmem:[#allocation2 + $0x158] sm:$0x1]
        %v1347 = vld [vmem:[#allocation2 + $0x160] sm:$0xfc]
        %v1348 = vld [vmem:[#allocation2 + $0x168] sm:$0xfc]
        %v1349 = vld [vmem:[#allocation2 + $0x170] sm:$0x1]
        %v1350 = vld [vmem:[#allocation2 + $0x178] sm:$0x1]
        %v1351 = vld [vmem:[#allocation2 + $0x180] sm:$0xfc]
        %v1352 = vld [vmem:[#allocation2 + $0x188] sm:$0xfc]
        %v1353 = vld [vmem:[#allocation2 + $0x190] sm:$0x1]
        %v1354 = vld [vmem:[#allocation2 + $0x198] sm:$0x1]
        %v1355 = vld [vmem:[#allocation2 + $0x1a0] sm:$0xfc]
        %v1356 = vld [vmem:[#allocation2 + $0x1a8] sm:$0xfc]
        %v1357 = vld [vmem:[#allocation2 + $0x1b0] sm:$0x1]
        %v1358 = vld [vmem:[#allocation2 + $0x1b8] sm:$0x1]
        %v1359 = vld [vmem:[#allocation2 + $0x1c0] sm:$0xfc]
        %v1360 = vld [vmem:[#allocation2 + $0x1c8] sm:$0xfc]
        %v1361 = vld [vmem:[#allocation2 + $0x1d0] sm:$0x1]
        %v1362 = vld [vmem:[#allocation2 + $0x1d8] sm:$0x1]
        %v1363 = vld [vmem:[#allocation2 + $0x1e0] sm:$0xfc]
        %v1364 = vld [vmem:[#allocation2 + $0x1e8] sm:$0xfc]
        %v1365 = vld [vmem:[#allocation2 + $0x1f0] sm:$0x1]
        %v1366 = vld [vmem:[#allocation2 + $0x1f8] sm:$0x1]
        %v1367 = vld [vmem:[#allocation2 + $0x200] sm:$0xfc]
        %v1368 = vld [vmem:[#allocation2 + $0x208] sm:$0xfc]
        %v1369 = vld [vmem:[#allocation2 + $0x210] sm:$0x1]
        %v1370 = vld [vmem:[#allocation2 + $0x218] sm:$0x1]
        %v1371 = vld [vmem:[#allocation2 + $0x220] sm:$0xfc]
        %v1372 = vld [vmem:[#allocation2 + $0x228] sm:$0xfc]
        %v1373 = vld [vmem:[#allocation2 + $0x230] sm:$0x1]
        %v1374 = vld [vmem:[#allocation2 + $0x238] sm:$0x1]
        %s1375 = scalar_lea.vmem %s306, 2 [#allocation4]
        %v1376 = vld [vmem:[%s1375] ss:$8 sm:$0x3]
        %v1378 = vlaneseq
        %v1379 = vshrl.u32 %v1378, 7
        %v1380 = vsub.s32 0, %v1379
        %v1381 = vrot.slane %v1376, %v1380
        %v1382 = vlaneseq
        %v1383 = vshrl.u32 %v1382, 7
        %v1384 = vsub.s32 1, %v1383
        %v1385 = vrot.slane %v1376, %v1384
        %v1388 = vmul.f32 %v1303, %v1381
        %v1389 = vmul.f32 %v1304, %v1385
        %v1390 = vmul.f32 %v1305, %v1381
        %v1391 = vmul.f32 %v1306, %v1385
        %v1392 = vmul.f32 %v1307, %v1381
        %v1393 = vmul.f32 %v1308, %v1385
        %v1394 = vmul.f32 %v1309, %v1381
        %v1395 = vmul.f32 %v1310, %v1385
        %v1396 = vmul.f32 %v1311, %v1381
        %v1397 = vmul.f32 %v1312, %v1385
        %v1398 = vmul.f32 %v1313, %v1381
        %v1399 = vmul.f32 %v1314, %v1385
        %v1400 = vmul.f32 %v1315, %v1381
        %v1401 = vmul.f32 %v1316, %v1385
        %v1402 = vmul.f32 %v1317, %v1381
        %v1403 = vmul.f32 %v1318, %v1385
        %v1404 = vmul.f32 %v1319, %v1381
        %v1405 = vmul.f32 %v1320, %v1385
        %v1406 = vmul.f32 %v1321, %v1381
        %v1407 = vmul.f32 %v1322, %v1385
        %v1408 = vmul.f32 %v1323, %v1381
        %v1409 = vmul.f32 %v1324, %v1385
        %v1410 = vmul.f32 %v1325, %v1381
        %v1411 = vmul.f32 %v1326, %v1385
        %v1412 = vmul.f32 %v1327, %v1381
        %v1413 = vmul.f32 %v1328, %v1385
        %v1414 = vmul.f32 %v1329, %v1381
        %v1415 = vmul.f32 %v1330, %v1385
        %v1416 = vmul.f32 %v1339, %v1381
        %v1417 = vmul.f32 %v1340, %v1385
        %v1418 = vmul.f32 %v1341, %v1381
        %v1419 = vmul.f32 %v1342, %v1385
        %v1420 = vmul.f32 %v1343, %v1381
        %v1421 = vmul.f32 %v1344, %v1385
        %v1422 = vmul.f32 %v1345, %v1381
        %v1423 = vmul.f32 %v1346, %v1385
        %v1424 = vmul.f32 %v1347, %v1381
        %v1425 = vmul.f32 %v1348, %v1385
        %v1426 = vmul.f32 %v1349, %v1381
        %v1427 = vmul.f32 %v1350, %v1385
        %v1428 = vmul.f32 %v1351, %v1381
        %v1429 = vmul.f32 %v1352, %v1385
        %v1430 = vmul.f32 %v1353, %v1381
        %v1431 = vmul.f32 %v1354, %v1385
        %v1432 = vmul.f32 %v1355, %v1381
        %v1433 = vmul.f32 %v1356, %v1385
        %v1434 = vmul.f32 %v1357, %v1381
        %v1435 = vmul.f32 %v1358, %v1385
        %v1436 = vmul.f32 %v1359, %v1381
        %v1437 = vmul.f32 %v1360, %v1385
        %v1438 = vmul.f32 %v1361, %v1381
        %v1439 = vmul.f32 %v1362, %v1385
        %v1440 = vmul.f32 %v1363, %v1381
        %v1441 = vmul.f32 %v1364, %v1385
        %v1442 = vmul.f32 %v1365, %v1381
        %v1443 = vmul.f32 %v1366, %v1385
        %vm1500 = vcmask 1045504
        %v1501 = vrot.slane %v1388, 2
        %v1502 = vrot.slane %v1390, 2
        %v1503 = vsel %vm1500, %v1501, %v1502
        %v1504 = vrot.slane %v1389, 2
        %v1505 = vrot.slane %v1391, 2
        %v1506 = vsel %vm1500, %v1504, %v1505
        %v1507 = vrot.slane %v1392, 2
        %v1508 = vrot.slane %v1394, 2
        %v1509 = vsel %vm1500, %v1507, %v1508
        %v1510 = vrot.slane %v1393, 2
        %v1511 = vrot.slane %v1395, 2
        %v1512 = vsel %vm1500, %v1510, %v1511
        %v1513 = vrot.slane %v1396, 2
        %v1514 = vrot.slane %v1398, 2
        %v1515 = vsel %vm1500, %v1513, %v1514
        %v1516 = vrot.slane %v1397, 2
        %v1517 = vrot.slane %v1399, 2
        %v1518 = vsel %vm1500, %v1516, %v1517
        %v1519 = vrot.slane %v1400, 2
        %v1520 = vrot.slane %v1402, 2
        %v1521 = vsel %vm1500, %v1519, %v1520
        %v1522 = vrot.slane %v1401, 2
        %v1523 = vrot.slane %v1403, 2
        %v1524 = vsel %vm1500, %v1522, %v1523
        %v1525 = vrot.slane %v1404, 2
        %v1526 = vrot.slane %v1406, 2
        %v1527 = vsel %vm1500, %v1525, %v1526
        %v1528 = vrot.slane %v1405, 2
        %v1529 = vrot.slane %v1407, 2
        %v1530 = vsel %vm1500, %v1528, %v1529
        %v1531 = vrot.slane %v1408, 2
        %v1532 = vrot.slane %v1410, 2
        %v1533 = vsel %vm1500, %v1531, %v1532
        %v1534 = vrot.slane %v1409, 2
        %v1535 = vrot.slane %v1411, 2
        %v1536 = vsel %vm1500, %v1534, %v1535
        %v1537 = vrot.slane %v1412, 2
        %v1538 = vrot.slane %v1414, 2
        %v1539 = vsel %vm1500, %v1537, %v1538
        %v1540 = vrot.slane %v1413, 2
        %v1541 = vrot.slane %v1415, 2
        %v1542 = vsel %vm1500, %v1540, %v1541
        %v1543 = vrot.slane %v1416, 2
        %v1544 = vrot.slane %v1418, 2
        %v1545 = vsel %vm1500, %v1543, %v1544
        %v1546 = vrot.slane %v1417, 2
        %v1547 = vrot.slane %v1419, 2
        %v1548 = vsel %vm1500, %v1546, %v1547
        %v1549 = vrot.slane %v1420, 2
        %v1550 = vrot.slane %v1422, 2
        %v1551 = vsel %vm1500, %v1549, %v1550
        %v1552 = vrot.slane %v1421, 2
        %v1553 = vrot.slane %v1423, 2
        %v1554 = vsel %vm1500, %v1552, %v1553
        %v1555 = vrot.slane %v1424, 2
        %v1556 = vrot.slane %v1426, 2
        %v1557 = vsel %vm1500, %v1555, %v1556
        %v1558 = vrot.slane %v1425, 2
        %v1559 = vrot.slane %v1427, 2
        %v1560 = vsel %vm1500, %v1558, %v1559
        %v1561 = vrot.slane %v1428, 2
        %v1562 = vrot.slane %v1430, 2
        %v1563 = vsel %vm1500, %v1561, %v1562
        %v1564 = vrot.slane %v1429, 2
        %v1565 = vrot.slane %v1431, 2
        %v1566 = vsel %vm1500, %v1564, %v1565
        %v1567 = vrot.slane %v1432, 2
        %v1568 = vrot.slane %v1434, 2
        %v1569 = vsel %vm1500, %v1567, %v1568
        %v1570 = vrot.slane %v1433, 2
        %v1571 = vrot.slane %v1435, 2
        %v1572 = vsel %vm1500, %v1570, %v1571
        %v1573 = vrot.slane %v1436, 2
        %v1574 = vrot.slane %v1438, 2
        %v1575 = vsel %vm1500, %v1573, %v1574
        %v1576 = vrot.slane %v1437, 2
        %v1577 = vrot.slane %v1439, 2
        %v1578 = vsel %vm1500, %v1576, %v1577
        %v1579 = vrot.slane %v1440, 2
        %v1580 = vrot.slane %v1442, 2
        %v1581 = vsel %vm1500, %v1579, %v1580
        %v1582 = vrot.slane %v1441, 2
        %v1583 = vrot.slane %v1443, 2
        %v1584 = vsel %vm1500, %v1582, %v1583
        %v1613 = vadd.f32 %v1275, %v1503
        %v1614 = vadd.f32 %v1276, %v1506
        %v1615 = vadd.f32 %v1277, %v1509
        %v1616 = vadd.f32 %v1278, %v1512
        %v1617 = vadd.f32 %v1279, %v1515
        %v1618 = vadd.f32 %v1280, %v1518
        %v1619 = vadd.f32 %v1281, %v1521
        %v1620 = vadd.f32 %v1282, %v1524
        %v1621 = vadd.f32 %v1283, %v1527
        %v1622 = vadd.f32 %v1284, %v1530
        %v1623 = vadd.f32 %v1285, %v1533
        %v1624 = vadd.f32 %v1286, %v1536
        %v1625 = vadd.f32 %v1287, %v1539
        %v1626 = vadd.f32 %v1288, %v1542
        %v1627 = vadd.f32 %v1289, %v1545
        %v1628 = vadd.f32 %v1290, %v1548
        %v1629 = vadd.f32 %v1291, %v1551
        %v1630 = vadd.f32 %v1292, %v1554
        %v1631 = vadd.f32 %v1293, %v1557
        %v1632 = vadd.f32 %v1294, %v1560
        %v1633 = vadd.f32 %v1295, %v1563
        %v1634 = vadd.f32 %v1296, %v1566
        %v1635 = vadd.f32 %v1297, %v1569
        %v1636 = vadd.f32 %v1298, %v1572
        %v1637 = vadd.f32 %v1299, %v1575
        %v1638 = vadd.f32 %v1300, %v1578
        %v1639 = vadd.f32 %v1301, %v1581
        %v1640 = vadd.f32 %v1302, %v1584
        %s1641 = scalar_lea.vmem %s306, 5 [#allocation4]
        %v1642 = vld [vmem:[%s1641] ss:$8 sm:$0x3]
        %v1644 = vlaneseq
        %v1645 = vshrl.u32 %v1644, 7
        %v1646 = vsub.s32 0, %v1645
        %v1647 = vrot.slane %v1642, %v1646
        %v1648 = vlaneseq
        %v1649 = vshrl.u32 %v1648, 7
        %v1650 = vsub.s32 1, %v1649
        %v1651 = vrot.slane %v1642, %v1650
        %v1654 = vmul.f32 %v1307, %v1647
        %v1655 = vmul.f32 %v1308, %v1651
        %v1656 = vmul.f32 %v1309, %v1647
        %v1657 = vmul.f32 %v1310, %v1651
        %v1658 = vmul.f32 %v1311, %v1647
        %v1659 = vmul.f32 %v1312, %v1651
        %v1660 = vmul.f32 %v1313, %v1647
        %v1661 = vmul.f32 %v1314, %v1651
        %v1662 = vmul.f32 %v1315, %v1647
        %v1663 = vmul.f32 %v1316, %v1651
        %v1664 = vmul.f32 %v1317, %v1647
        %v1665 = vmul.f32 %v1318, %v1651
        %v1666 = vmul.f32 %v1319, %v1647
        %v1667 = vmul.f32 %v1320, %v1651
        %v1668 = vmul.f32 %v1321, %v1647
        %v1669 = vmul.f32 %v1322, %v1651
        %v1670 = vmul.f32 %v1323, %v1647
        %v1671 = vmul.f32 %v1324, %v1651
        %v1672 = vmul.f32 %v1325, %v1647
        %v1673 = vmul.f32 %v1326, %v1651
        %v1674 = vmul.f32 %v1327, %v1647
        %v1675 = vmul.f32 %v1328, %v1651
        %v1676 = vmul.f32 %v1329, %v1647
        %v1677 = vmul.f32 %v1330, %v1651
        %v1678 = vmul.f32 %v1331, %v1647
        %v1679 = vmul.f32 %v1332, %v1651
        %v1680 = vmul.f32 %v1333, %v1647
        %v1681 = vmul.f32 %v1334, %v1651
        %v1682 = vmul.f32 %v1343, %v1647
        %v1683 = vmul.f32 %v1344, %v1651
        %v1684 = vmul.f32 %v1345, %v1647
        %v1685 = vmul.f32 %v1346, %v1651
        %v1686 = vmul.f32 %v1347, %v1647
        %v1687 = vmul.f32 %v1348, %v1651
        %v1688 = vmul.f32 %v1349, %v1647
        %v1689 = vmul.f32 %v1350, %v1651
        %v1690 = vmul.f32 %v1351, %v1647
        %v1691 = vmul.f32 %v1352, %v1651
        %v1692 = vmul.f32 %v1353, %v1647
        %v1693 = vmul.f32 %v1354, %v1651
        %v1694 = vmul.f32 %v1355, %v1647
        %v1695 = vmul.f32 %v1356, %v1651
        %v1696 = vmul.f32 %v1357, %v1647
        %v1697 = vmul.f32 %v1358, %v1651
        %v1698 = vmul.f32 %v1359, %v1647
        %v1699 = vmul.f32 %v1360, %v1651
        %v1700 = vmul.f32 %v1361, %v1647
        %v1701 = vmul.f32 %v1362, %v1651
        %v1702 = vmul.f32 %v1363, %v1647
        %v1703 = vmul.f32 %v1364, %v1651
        %v1704 = vmul.f32 %v1365, %v1647
        %v1705 = vmul.f32 %v1366, %v1651
        %v1706 = vmul.f32 %v1367, %v1647
        %v1707 = vmul.f32 %v1368, %v1651
        %v1708 = vmul.f32 %v1369, %v1647
        %v1709 = vmul.f32 %v1370, %v1651
        %v1766 = vrot.slane %v1654, 2
        %v1767 = vrot.slane %v1656, 2
        %v1768 = vsel %vm1500, %v1766, %v1767
        %v1769 = vrot.slane %v1655, 2
        %v1770 = vrot.slane %v1657, 2
        %v1771 = vsel %vm1500, %v1769, %v1770
        %v1772 = vrot.slane %v1658, 2
        %v1773 = vrot.slane %v1660, 2
        %v1774 = vsel %vm1500, %v1772, %v1773
        %v1775 = vrot.slane %v1659, 2
        %v1776 = vrot.slane %v1661, 2
        %v1777 = vsel %vm1500, %v1775, %v1776
        %v1778 = vrot.slane %v1662, 2
        %v1779 = vrot.slane %v1664, 2
        %v1780 = vsel %vm1500, %v1778, %v1779
        %v1781 = vrot.slane %v1663, 2
        %v1782 = vrot.slane %v1665, 2
        %v1783 = vsel %vm1500, %v1781, %v1782
        %v1784 = vrot.slane %v1666, 2
        %v1785 = vrot.slane %v1668, 2
        %v1786 = vsel %vm1500, %v1784, %v1785
        %v1787 = vrot.slane %v1667, 2
        %v1788 = vrot.slane %v1669, 2
        %v1789 = vsel %vm1500, %v1787, %v1788
        %v1790 = vrot.slane %v1670, 2
        %v1791 = vrot.slane %v1672, 2
        %v1792 = vsel %vm1500, %v1790, %v1791
        %v1793 = vrot.slane %v1671, 2
        %v1794 = vrot.slane %v1673, 2
        %v1795 = vsel %vm1500, %v1793, %v1794
        %v1796 = vrot.slane %v1674, 2
        %v1797 = vrot.slane %v1676, 2
        %v1798 = vsel %vm1500, %v1796, %v1797
        %v1799 = vrot.slane %v1675, 2
        %v1800 = vrot.slane %v1677, 2
        %v1801 = vsel %vm1500, %v1799, %v1800
        %v1802 = vrot.slane %v1678, 2
        %v1803 = vrot.slane %v1680, 2
        %v1804 = vsel %vm1500, %v1802, %v1803
        %v1805 = vrot.slane %v1679, 2
        %v1806 = vrot.slane %v1681, 2
        %v1807 = vsel %vm1500, %v1805, %v1806
        %v1808 = vrot.slane %v1682, 2
        %v1809 = vrot.slane %v1684, 2
        %v1810 = vsel %vm1500, %v1808, %v1809
        %v1811 = vrot.slane %v1683, 2
        %v1812 = vrot.slane %v1685, 2
        %v1813 = vsel %vm1500, %v1811, %v1812
        %v1814 = vrot.slane %v1686, 2
        %v1815 = vrot.slane %v1688, 2
        %v1816 = vsel %vm1500, %v1814, %v1815
        %v1817 = vrot.slane %v1687, 2
        %v1818 = vrot.slane %v1689, 2
        %v1819 = vsel %vm1500, %v1817, %v1818
        %v1820 = vrot.slane %v1690, 2
        %v1821 = vrot.slane %v1692, 2
        %v1822 = vsel %vm1500, %v1820, %v1821
        %v1823 = vrot.slane %v1691, 2
        %v1824 = vrot.slane %v1693, 2
        %v1825 = vsel %vm1500, %v1823, %v1824
        %v1826 = vrot.slane %v1694, 2
        %v1827 = vrot.slane %v1696, 2
        %v1828 = vsel %vm1500, %v1826, %v1827
        %v1829 = vrot.slane %v1695, 2
        %v1830 = vrot.slane %v1697, 2
        %v1831 = vsel %vm1500, %v1829, %v1830
        %v1832 = vrot.slane %v1698, 2
        %v1833 = vrot.slane %v1700, 2
        %v1834 = vsel %vm1500, %v1832, %v1833
        %v1835 = vrot.slane %v1699, 2
        %v1836 = vrot.slane %v1701, 2
        %v1837 = vsel %vm1500, %v1835, %v1836
        %v1838 = vrot.slane %v1702, 2
        %v1839 = vrot.slane %v1704, 2
        %v1840 = vsel %vm1500, %v1838, %v1839
        %v1841 = vrot.slane %v1703, 2
        %v1842 = vrot.slane %v1705, 2
        %v1843 = vsel %vm1500, %v1841, %v1842
        %v1844 = vrot.slane %v1706, 2
        %v1845 = vrot.slane %v1708, 2
        %v1846 = vsel %vm1500, %v1844, %v1845
        %v1847 = vrot.slane %v1707, 2
        %v1848 = vrot.slane %v1709, 2
        %v1849 = vsel %vm1500, %v1847, %v1848
        %v1878 = vadd.f32 %v1613, %v1768
        %v1879 = vadd.f32 %v1614, %v1771
        %v1880 = vadd.f32 %v1615, %v1774
        %v1881 = vadd.f32 %v1616, %v1777
        %v1882 = vadd.f32 %v1617, %v1780
        %v1883 = vadd.f32 %v1618, %v1783
        %v1884 = vadd.f32 %v1619, %v1786
        %v1885 = vadd.f32 %v1620, %v1789
        %v1886 = vadd.f32 %v1621, %v1792
        %v1887 = vadd.f32 %v1622, %v1795
        %v1888 = vadd.f32 %v1623, %v1798
        %v1889 = vadd.f32 %v1624, %v1801
        %v1890 = vadd.f32 %v1625, %v1804
        %v1891 = vadd.f32 %v1626, %v1807
        %v1892 = vadd.f32 %v1627, %v1810
        %v1893 = vadd.f32 %v1628, %v1813
        %v1894 = vadd.f32 %v1629, %v1816
        %v1895 = vadd.f32 %v1630, %v1819
        %v1896 = vadd.f32 %v1631, %v1822
        %v1897 = vadd.f32 %v1632, %v1825
        %v1898 = vadd.f32 %v1633, %v1828
        %v1899 = vadd.f32 %v1634, %v1831
        %v1900 = vadd.f32 %v1635, %v1834
        %v1901 = vadd.f32 %v1636, %v1837
        %v1902 = vadd.f32 %v1637, %v1840
        %v1903 = vadd.f32 %v1638, %v1843
        %v1904 = vadd.f32 %v1639, %v1846
        %v1905 = vadd.f32 %v1640, %v1849
        %s1906 = scalar_lea.vmem %s306, 16 [#allocation4]
        %v1907 = vld [vmem:[%s1906] ss:$8 sm:$0x3]
        %v1909 = vlaneseq
        %v1910 = vshrl.u32 %v1909, 7
        %v1911 = vsub.s32 0, %v1910
        %v1912 = vrot.slane %v1907, %v1911
        %v1913 = vlaneseq
        %v1914 = vshrl.u32 %v1913, 7
        %v1915 = vsub.s32 1, %v1914
        %v1916 = vrot.slane %v1907, %v1915
        %v1919 = vmul.f32 %v1311, %v1912
        %v1920 = vmul.f32 %v1312, %v1916
        %v1921 = vmul.f32 %v1313, %v1912
        %v1922 = vmul.f32 %v1314, %v1916
        %v1923 = vmul.f32 %v1315, %v1912
        %v1924 = vmul.f32 %v1316, %v1916
        %v1925 = vmul.f32 %v1317, %v1912
        %v1926 = vmul.f32 %v1318, %v1916
        %v1927 = vmul.f32 %v1319, %v1912
        %v1928 = vmul.f32 %v1320, %v1916
        %v1929 = vmul.f32 %v1321, %v1912
        %v1930 = vmul.f32 %v1322, %v1916
        %v1931 = vmul.f32 %v1323, %v1912
        %v1932 = vmul.f32 %v1324, %v1916
        %v1933 = vmul.f32 %v1325, %v1912
        %v1934 = vmul.f32 %v1326, %v1916
        %v1935 = vmul.f32 %v1327, %v1912
        %v1936 = vmul.f32 %v1328, %v1916
        %v1937 = vmul.f32 %v1329, %v1912
        %v1938 = vmul.f32 %v1330, %v1916
        %v1939 = vmul.f32 %v1331, %v1912
        %v1940 = vmul.f32 %v1332, %v1916
        %v1941 = vmul.f32 %v1333, %v1912
        %v1942 = vmul.f32 %v1334, %v1916
        %v1943 = vmul.f32 %v1335, %v1912
        %v1944 = vmul.f32 %v1336, %v1916
        %v1945 = vmul.f32 %v1337, %v1912
        %v1946 = vmul.f32 %v1338, %v1916
        %v1947 = vmul.f32 %v1347, %v1912
        %v1948 = vmul.f32 %v1348, %v1916
        %v1949 = vmul.f32 %v1349, %v1912
        %v1950 = vmul.f32 %v1350, %v1916
        %v1951 = vmul.f32 %v1351, %v1912
        %v1952 = vmul.f32 %v1352, %v1916
        %v1953 = vmul.f32 %v1353, %v1912
        %v1954 = vmul.f32 %v1354, %v1916
        %v1955 = vmul.f32 %v1355, %v1912
        %v1956 = vmul.f32 %v1356, %v1916
        %v1957 = vmul.f32 %v1357, %v1912
        %v1958 = vmul.f32 %v1358, %v1916
        %v1959 = vmul.f32 %v1359, %v1912
        %v1960 = vmul.f32 %v1360, %v1916
        %v1961 = vmul.f32 %v1361, %v1912
        %v1962 = vmul.f32 %v1362, %v1916
        %v1963 = vmul.f32 %v1363, %v1912
        %v1964 = vmul.f32 %v1364, %v1916
        %v1965 = vmul.f32 %v1365, %v1912
        %v1966 = vmul.f32 %v1366, %v1916
        %v1967 = vmul.f32 %v1367, %v1912
        %v1968 = vmul.f32 %v1368, %v1916
        %v1969 = vmul.f32 %v1369, %v1912
        %v1970 = vmul.f32 %v1370, %v1916
        %v1971 = vmul.f32 %v1371, %v1912
        %v1972 = vmul.f32 %v1372, %v1916
        %v1973 = vmul.f32 %v1373, %v1912
        %v1974 = vmul.f32 %v1374, %v1916
        %v2031 = vrot.slane %v1919, 2
        %v2032 = vrot.slane %v1921, 2
        %v2033 = vsel %vm1500, %v2031, %v2032
        %v2034 = vrot.slane %v1920, 2
        %v2035 = vrot.slane %v1922, 2
        %v2036 = vsel %vm1500, %v2034, %v2035
        %v2037 = vrot.slane %v1923, 2
        %v2038 = vrot.slane %v1925, 2
        %v2039 = vsel %vm1500, %v2037, %v2038
        %v2040 = vrot.slane %v1924, 2
        %v2041 = vrot.slane %v1926, 2
        %v2042 = vsel %vm1500, %v2040, %v2041
        %v2043 = vrot.slane %v1927, 2
        %v2044 = vrot.slane %v1929, 2
        %v2045 = vsel %vm1500, %v2043, %v2044
        %v2046 = vrot.slane %v1928, 2
        %v2047 = vrot.slane %v1930, 2
        %v2048 = vsel %vm1500, %v2046, %v2047
        %v2049 = vrot.slane %v1931, 2
        %v2050 = vrot.slane %v1933, 2
        %v2051 = vsel %vm1500, %v2049, %v2050
        %v2052 = vrot.slane %v1932, 2
        %v2053 = vrot.slane %v1934, 2
        %v2054 = vsel %vm1500, %v2052, %v2053
        %v2055 = vrot.slane %v1935, 2
        %v2056 = vrot.slane %v1937, 2
        %v2057 = vsel %vm1500, %v2055, %v2056
        %v2058 = vrot.slane %v1936, 2
        %v2059 = vrot.slane %v1938, 2
        %v2060 = vsel %vm1500, %v2058, %v2059
        %v2061 = vrot.slane %v1939, 2
        %v2062 = vrot.slane %v1941, 2
        %v2063 = vsel %vm1500, %v2061, %v2062
        %v2064 = vrot.slane %v1940, 2
        %v2065 = vrot.slane %v1942, 2
        %v2066 = vsel %vm1500, %v2064, %v2065
        %v2067 = vrot.slane %v1943, 2
        %v2068 = vrot.slane %v1945, 2
        %v2069 = vsel %vm1500, %v2067, %v2068
        %v2070 = vrot.slane %v1944, 2
        %v2071 = vrot.slane %v1946, 2
        %v2072 = vsel %vm1500, %v2070, %v2071
        %v2073 = vrot.slane %v1947, 2
        %v2074 = vrot.slane %v1949, 2
        %v2075 = vsel %vm1500, %v2073, %v2074
        %v2076 = vrot.slane %v1948, 2
        %v2077 = vrot.slane %v1950, 2
        %v2078 = vsel %vm1500, %v2076, %v2077
        %v2079 = vrot.slane %v1951, 2
        %v2080 = vrot.slane %v1953, 2
        %v2081 = vsel %vm1500, %v2079, %v2080
        %v2082 = vrot.slane %v1952, 2
        %v2083 = vrot.slane %v1954, 2
        %v2084 = vsel %vm1500, %v2082, %v2083
        %v2085 = vrot.slane %v1955, 2
        %v2086 = vrot.slane %v1957, 2
        %v2087 = vsel %vm1500, %v2085, %v2086
        %v2088 = vrot.slane %v1956, 2
        %v2089 = vrot.slane %v1958, 2
        %v2090 = vsel %vm1500, %v2088, %v2089
        %v2091 = vrot.slane %v1959, 2
        %v2092 = vrot.slane %v1961, 2
        %v2093 = vsel %vm1500, %v2091, %v2092
        %v2094 = vrot.slane %v1960, 2
        %v2095 = vrot.slane %v1962, 2
        %v2096 = vsel %vm1500, %v2094, %v2095
        %v2097 = vrot.slane %v1963, 2
        %v2098 = vrot.slane %v1965, 2
        %v2099 = vsel %vm1500, %v2097, %v2098
        %v2100 = vrot.slane %v1964, 2
        %v2101 = vrot.slane %v1966, 2
        %v2102 = vsel %vm1500, %v2100, %v2101
        %v2103 = vrot.slane %v1967, 2
        %v2104 = vrot.slane %v1969, 2
        %v2105 = vsel %vm1500, %v2103, %v2104
        %v2106 = vrot.slane %v1968, 2
        %v2107 = vrot.slane %v1970, 2
        %v2108 = vsel %vm1500, %v2106, %v2107
        %v2109 = vrot.slane %v1971, 2
        %v2110 = vrot.slane %v1973, 2
        %v2111 = vsel %vm1500, %v2109, %v2110
        %v2112 = vrot.slane %v1972, 2
        %v2113 = vrot.slane %v1974, 2
        %v2114 = vsel %vm1500, %v2112, %v2113
        %v2143 = vadd.f32 %v1878, %v2033
        %v2144 = vadd.f32 %v1879, %v2036
        %v2145 = vadd.f32 %v1880, %v2039
        %v2146 = vadd.f32 %v1881, %v2042
        %v2147 = vadd.f32 %v1882, %v2045
        %v2148 = vadd.f32 %v1883, %v2048
        %v2149 = vadd.f32 %v1884, %v2051
        %v2150 = vadd.f32 %v1885, %v2054
        %v2151 = vadd.f32 %v1886, %v2057
        %v2152 = vadd.f32 %v1887, %v2060
        %v2153 = vadd.f32 %v1888, %v2063
        %v2154 = vadd.f32 %v1889, %v2066
        %v2155 = vadd.f32 %v1890, %v2069
        %v2156 = vadd.f32 %v1891, %v2072
        %v2157 = vadd.f32 %v1892, %v2075
        %v2158 = vadd.f32 %v1893, %v2078
        %v2159 = vadd.f32 %v1894, %v2081
        %v2160 = vadd.f32 %v1895, %v2084
        %v2161 = vadd.f32 %v1896, %v2087
        %v2162 = vadd.f32 %v1897, %v2090
        %v2163 = vadd.f32 %v1898, %v2093
        %v2164 = vadd.f32 %v1899, %v2096
        %v2165 = vadd.f32 %v1900, %v2099
        %v2166 = vadd.f32 %v1901, %v2102
        %v2167 = vadd.f32 %v1902, %v2105
        %v2168 = vadd.f32 %v1903, %v2108
        %v2169 = vadd.f32 %v1904, %v2111
        %v2170 = vadd.f32 %v1905, %v2114
        %vm2171 = vcmask 1046528
        %v2172 = vsel %vm2171, %v2143, 0.0
        %v2173 = vsel %vm2171, %v2145, 0.0
        %v2174 = vadd.f32 %v2172, %v2173
        %v2175 = vsel %vm2171, %v2147, 0.0
        %v2176 = vadd.f32 %v2174, %v2175
        %v2177 = vsel %vm2171, %v2149, 0.0
        %v2178 = vadd.f32 %v2176, %v2177
        %v2179 = vsel %vm2171, %v2151, 0.0
        %v2180 = vadd.f32 %v2178, %v2179
        %v2181 = vsel %vm2171, %v2153, 0.0
        %v2182 = vadd.f32 %v2180, %v2181
        %v2183 = vsel %vm2171, %v2155, 0.0
        %v2184 = vadd.f32 %v2182, %v2183
        %v2185 = vsel %vm2171, %v2157, 0.0
        %v2186 = vadd.f32 %v2184, %v2185
        %v2187 = vsel %vm2171, %v2159, 0.0
        %v2188 = vadd.f32 %v2186, %v2187
        %v2189 = vsel %vm2171, %v2161, 0.0
        %v2190 = vadd.f32 %v2188, %v2189
        %v2191 = vsel %vm2171, %v2163, 0.0
        %v2192 = vadd.f32 %v2190, %v2191
        %v2193 = vsel %vm2171, %v2165, 0.0
        %v2194 = vadd.f32 %v2192, %v2193
        %v2195 = vsel %vm2171, %v2167, 0.0
        %v2196 = vadd.f32 %v2194, %v2195
        %v2197 = vsel %vm2171, %v2169, 0.0
        %v2198 = vadd.f32 %v2196, %v2197
        %v2199 = vrot.slane %v2198, 4
        %v2200 = vadd.f32 %v2198, %v2199
        %v2201 = vrot.slane %v2200, 2
        %v2202 = vadd.f32 %v2200, %v2201
        %v2203 = vrot.slane %v2202, 1
        %v2204 = vadd.f32 %v2202, %v2203
        %v2205 = vsel %vm2171, %v2144, 0.0
        %v2206 = vsel %vm2171, %v2146, 0.0
        %v2207 = vadd.f32 %v2205, %v2206
        %v2208 = vsel %vm2171, %v2148, 0.0
        %v2209 = vadd.f32 %v2207, %v2208
        %v2210 = vsel %vm2171, %v2150, 0.0
        %v2211 = vadd.f32 %v2209, %v2210
        %v2212 = vsel %vm2171, %v2152, 0.0
        %v2213 = vadd.f32 %v2211, %v2212
        %v2214 = vsel %vm2171, %v2154, 0.0
        %v2215 = vadd.f32 %v2213, %v2214
        %v2216 = vsel %vm2171, %v2156, 0.0
        %v2217 = vadd.f32 %v2215, %v2216
        %v2218 = vsel %vm2171, %v2158, 0.0
        %v2219 = vadd.f32 %v2217, %v2218
        %v2220 = vsel %vm2171, %v2160, 0.0
        %v2221 = vadd.f32 %v2219, %v2220
        %v2222 = vsel %vm2171, %v2162, 0.0
        %v2223 = vadd.f32 %v2221, %v2222
        %v2224 = vsel %vm2171, %v2164, 0.0
        %v2225 = vadd.f32 %v2223, %v2224
        %v2226 = vsel %vm2171, %v2166, 0.0
        %v2227 = vadd.f32 %v2225, %v2226
        %v2228 = vsel %vm2171, %v2168, 0.0
        %v2229 = vadd.f32 %v2227, %v2228
        %v2230 = vsel %vm2171, %v2170, 0.0
        %v2231 = vadd.f32 %v2229, %v2230
        %v2232 = vrot.slane %v2231, 4
        %v2233 = vadd.f32 %v2231, %v2232
        %v2234 = vrot.slane %v2233, 2
        %v2235 = vadd.f32 %v2233, %v2234
        %v2236 = vrot.slane %v2235, 1
        %v2237 = vadd.f32 %v2235, %v2236
        %v2238 = vrcp.pop 98.0
        %v2239 = vmul.f32 %v2204, %v2238
        %v2240 = vmul.f32 %v2237, %v2238
        %v2241 = vmul.f32 %v2143, %v2143
        %v2242 = vmul.f32 %v2144, %v2144
        %v2243 = vmul.f32 %v2145, %v2145
        %v2244 = vmul.f32 %v2146, %v2146
        %v2245 = vmul.f32 %v2147, %v2147
        %v2246 = vmul.f32 %v2148, %v2148
        %v2247 = vmul.f32 %v2149, %v2149
        %v2248 = vmul.f32 %v2150, %v2150
        %v2249 = vmul.f32 %v2151, %v2151
        %v2250 = vmul.f32 %v2152, %v2152
        %v2251 = vmul.f32 %v2153, %v2153
        %v2252 = vmul.f32 %v2154, %v2154
        %v2253 = vmul.f32 %v2155, %v2155
        %v2254 = vmul.f32 %v2156, %v2156
        %v2255 = vmul.f32 %v2157, %v2157
        %v2256 = vmul.f32 %v2158, %v2158
        %v2257 = vmul.f32 %v2159, %v2159
        %v2258 = vmul.f32 %v2160, %v2160
        %v2259 = vmul.f32 %v2161, %v2161
        %v2260 = vmul.f32 %v2162, %v2162
        %v2261 = vmul.f32 %v2163, %v2163
        %v2262 = vmul.f32 %v2164, %v2164
        %v2263 = vmul.f32 %v2165, %v2165
        %v2264 = vmul.f32 %v2166, %v2166
        %v2265 = vmul.f32 %v2167, %v2167
        %v2266 = vmul.f32 %v2168, %v2168
        %v2267 = vmul.f32 %v2169, %v2169
        %v2268 = vmul.f32 %v2170, %v2170
        %v2269 = vsel %vm2171, %v2241, 0.0
        %v2270 = vsel %vm2171, %v2243, 0.0
        %v2271 = vadd.f32 %v2269, %v2270
        %v2272 = vsel %vm2171, %v2245, 0.0
        %v2273 = vadd.f32 %v2271, %v2272
        %v2274 = vsel %vm2171, %v2247, 0.0
        %v2275 = vadd.f32 %v2273, %v2274
        %v2276 = vsel %vm2171, %v2249, 0.0
        %v2277 = vadd.f32 %v2275, %v2276
        %v2278 = vsel %vm2171, %v2251, 0.0
        %v2279 = vadd.f32 %v2277, %v2278
        %v2280 = vsel %vm2171, %v2253, 0.0
        %v2281 = vadd.f32 %v2279, %v2280
        %v2282 = vsel %vm2171, %v2255, 0.0
        %v2283 = vadd.f32 %v2281, %v2282
        %v2284 = vsel %vm2171, %v2257, 0.0
        %v2285 = vadd.f32 %v2283, %v2284
        %v2286 = vsel %vm2171, %v2259, 0.0
        %v2287 = vadd.f32 %v2285, %v2286
        %v2288 = vsel %vm2171, %v2261, 0.0
        %v2289 = vadd.f32 %v2287, %v2288
        %v2290 = vsel %vm2171, %v2263, 0.0
        %v2291 = vadd.f32 %v2289, %v2290
        %v2292 = vsel %vm2171, %v2265, 0.0
        %v2293 = vadd.f32 %v2291, %v2292
        %v2294 = vsel %vm2171, %v2267, 0.0
        %v2295 = vadd.f32 %v2293, %v2294
        %v2296 = vrot.slane %v2295, 4
        %v2297 = vadd.f32 %v2295, %v2296
        %v2298 = vrot.slane %v2297, 2
        %v2299 = vadd.f32 %v2297, %v2298
        %v2300 = vrot.slane %v2299, 1
        %v2301 = vadd.f32 %v2299, %v2300
        %v2302 = vsel %vm2171, %v2242, 0.0
        %v2303 = vsel %vm2171, %v2244, 0.0
        %v2304 = vadd.f32 %v2302, %v2303
        %v2305 = vsel %vm2171, %v2246, 0.0
        %v2306 = vadd.f32 %v2304, %v2305
        %v2307 = vsel %vm2171, %v2248, 0.0
        %v2308 = vadd.f32 %v2306, %v2307
        %v2309 = vsel %vm2171, %v2250, 0.0
        %v2310 = vadd.f32 %v2308, %v2309
        %v2311 = vsel %vm2171, %v2252, 0.0
        %v2312 = vadd.f32 %v2310, %v2311
        %v2313 = vsel %vm2171, %v2254, 0.0
        %v2314 = vadd.f32 %v2312, %v2313
        %v2315 = vsel %vm2171, %v2256, 0.0
        %v2316 = vadd.f32 %v2314, %v2315
        %v2317 = vsel %vm2171, %v2258, 0.0
        %v2318 = vadd.f32 %v2316, %v2317
        %v2319 = vsel %vm2171, %v2260, 0.0
        %v2320 = vadd.f32 %v2318, %v2319
        %v2321 = vsel %vm2171, %v2262, 0.0
        %v2322 = vadd.f32 %v2320, %v2321
        %v2323 = vsel %vm2171, %v2264, 0.0
        %v2324 = vadd.f32 %v2322, %v2323
        %v2325 = vsel %vm2171, %v2266, 0.0
        %v2326 = vadd.f32 %v2324, %v2325
        %v2327 = vsel %vm2171, %v2268, 0.0
        %v2328 = vadd.f32 %v2326, %v2327
        %v2329 = vrot.slane %v2328, 4
        %v2330 = vadd.f32 %v2328, %v2329
        %v2331 = vrot.slane %v2330, 2
        %v2332 = vadd.f32 %v2330, %v2331
        %v2333 = vrot.slane %v2332, 1
        %v2334 = vadd.f32 %v2332, %v2333
        %v2335 = vmul.f32 %v2301, %v2238
        %v2336 = vmul.f32 %v2334, %v2238
        %v2337 = vmul.f32 %v2239, %v2239
        %v2338 = vmul.f32 %v2240, %v2240
        %v2339 = vsub.f32 %v2335, %v2337
        %v2340 = vsub.f32 %v2336, %v2338
        %v2341 = vadd.f32 %v2339, 1e-05
        %v2342 = vadd.f32 %v2340, 1e-05
        %v2343 = vrsqrt.pop %v2341
        %v2344 = vrsqrt.pop %v2342
        %v2345 = vld [vmem:[%s345] sm:$0x3]
        %v2346 = vld [vmem:[%s350] sm:$0x3]
        %v2349 = vcombine.low %v2343, %v2344
        %v2351 = vunpack.c.l.s4 1966171168
        %v2352 = vunpack.c.0.s8 %v2351
        %v2353 = vlaneseq
        %v2354 = vshrl.u32 %v2353, 7
        %v2355 = vsub.s32 %v2352, %v2354
        %v2356 = vrot.slane %v2349, %v2355
        %v2358 = vunpack.c.l.s4 1966171168
        %v2359 = vunpack.c.0.s8 %v2358
        %v2360 = vlaneseq
        %v2361 = vshrl.u32 %v2360, 7
        %v2362 = vsub.s32 %v2359, %v2361
        %v2363 = vrot.slane %v2356, %v2362
        %v2365 = vmul.f32 %v2345, %v2363
        %v2367 = vlaneseq
        %v2368 = vshrl.u32 %v2367, 7
        %v2369 = vsub.s32 0, %v2368
        %v2370 = vrot.slane %v2365, %v2369
        %v2371 = vlaneseq
        %v2372 = vshrl.u32 %v2371, 7
        %v2373 = vsub.s32 1, %v2372
        %v2374 = vrot.slane %v2365, %v2373
        %v2377 = vmul.f32 %v2239, %v2370
        %v2378 = vmul.f32 %v2240, %v2374
        %v2381 = vcombine.low %v2377, %v2378
        %v2383 = vunpack.c.l.s4 1966171168
        %v2384 = vunpack.c.0.s8 %v2383
        %v2385 = vlaneseq
        %v2386 = vshrl.u32 %v2385, 7
        %v2387 = vsub.s32 %v2384, %v2386
        %v2388 = vrot.slane %v2381, %v2387
        %v2390 = vunpack.c.l.s4 1966171168
        %v2391 = vunpack.c.0.s8 %v2390
        %v2392 = vlaneseq
        %v2393 = vshrl.u32 %v2392, 7
        %v2394 = vsub.s32 %v2391, %v2393
        %v2395 = vrot.slane %v2388, %v2394
        %v2397 = vsub.f32 %v2346, %v2395
        %v2398 = vmul.f32 %v2143, %v2370
        %v2399 = vmul.f32 %v2144, %v2374
        %v2400 = vmul.f32 %v2145, %v2370
        %v2401 = vmul.f32 %v2146, %v2374
        %v2402 = vmul.f32 %v2147, %v2370
        %v2403 = vmul.f32 %v2148, %v2374
        %v2404 = vmul.f32 %v2149, %v2370
        %v2405 = vmul.f32 %v2150, %v2374
        %v2406 = vmul.f32 %v2151, %v2370
        %v2407 = vmul.f32 %v2152, %v2374
        %v2408 = vmul.f32 %v2153, %v2370
        %v2409 = vmul.f32 %v2154, %v2374
        %v2410 = vmul.f32 %v2155, %v2370
        %v2411 = vmul.f32 %v2156, %v2374
        %v2412 = vmul.f32 %v2157, %v2370
        %v2413 = vmul.f32 %v2158, %v2374
        %v2414 = vmul.f32 %v2159, %v2370
        %v2415 = vmul.f32 %v2160, %v2374
        %v2416 = vmul.f32 %v2161, %v2370
        %v2417 = vmul.f32 %v2162, %v2374
        %v2418 = vmul.f32 %v2163, %v2370
        %v2419 = vmul.f32 %v2164, %v2374
        %v2420 = vmul.f32 %v2165, %v2370
        %v2421 = vmul.f32 %v2166, %v2374
        %v2422 = vmul.f32 %v2167, %v2370
        %v2423 = vmul.f32 %v2168, %v2374
        %v2424 = vmul.f32 %v2169, %v2370
        %v2425 = vmul.f32 %v2170, %v2374
        %v2427 = vlaneseq
        %v2428 = vshrl.u32 %v2427, 7
        %v2429 = vsub.s32 0, %v2428
        %v2430 = vrot.slane %v2397, %v2429
        %v2431 = vlaneseq
        %v2432 = vshrl.u32 %v2431, 7
        %v2433 = vsub.s32 1, %v2432
        %v2434 = vrot.slane %v2397, %v2433
        %v2437 = vadd.f32 %v2398, %v2430
        %v2438 = vadd.f32 %v2399, %v2434
        %v2439 = vadd.f32 %v2400, %v2430
        %v2440 = vadd.f32 %v2401, %v2434
        %v2441 = vadd.f32 %v2402, %v2430
        %v2442 = vadd.f32 %v2403, %v2434
        %v2443 = vadd.f32 %v2404, %v2430
        %v2444 = vadd.f32 %v2405, %v2434
        %v2445 = vadd.f32 %v2406, %v2430
        %v2446 = vadd.f32 %v2407, %v2434
        %v2447 = vadd.f32 %v2408, %v2430
        %v2448 = vadd.f32 %v2409, %v2434
        %v2449 = vadd.f32 %v2410, %v2430
        %v2450 = vadd.f32 %v2411, %v2434
        %v2451 = vadd.f32 %v2412, %v2430
        %v2452 = vadd.f32 %v2413, %v2434
        %v2453 = vadd.f32 %v2414, %v2430
        %v2454 = vadd.f32 %v2415, %v2434
        %v2455 = vadd.f32 %v2416, %v2430
        %v2456 = vadd.f32 %v2417, %v2434
        %v2457 = vadd.f32 %v2418, %v2430
        %v2458 = vadd.f32 %v2419, %v2434
        %v2459 = vadd.f32 %v2420, %v2430
        %v2460 = vadd.f32 %v2421, %v2434
        %v2461 = vadd.f32 %v2422, %v2430
        %v2462 = vadd.f32 %v2423, %v2434
        %v2463 = vadd.f32 %v2424, %v2430
        %v2464 = vadd.f32 %v2425, %v2434
        %2465 = vst [vmem:[%s339] sm:$0x7f] %v2437
        %2466 = vst [vmem:[%s339 + $0x8] sm:$0x7f] %v2438
        %2467 = vst [vmem:[%s339 + $0x10] sm:$0x7f] %v2439
        %2468 = vst [vmem:[%s339 + $0x18] sm:$0x7f] %v2440
        %2469 = vst [vmem:[%s339 + $0x20] sm:$0x7f] %v2441
        %2470 = vst [vmem:[%s339 + $0x28] sm:$0x7f] %v2442
        %2471 = vst [vmem:[%s339 + $0x30] sm:$0x7f] %v2443
        %2472 = vst [vmem:[%s339 + $0x38] sm:$0x7f] %v2444
        %2473 = vst [vmem:[%s339 + $0x40] sm:$0x7f] %v2445
        %2474 = vst [vmem:[%s339 + $0x48] sm:$0x7f] %v2446
        %2475 = vst [vmem:[%s339 + $0x50] sm:$0x7f] %v2447
        %2476 = vst [vmem:[%s339 + $0x58] sm:$0x7f] %v2448
        %2477 = vst [vmem:[%s339 + $0x60] sm:$0x7f] %v2449
        %2478 = vst [vmem:[%s339 + $0x68] sm:$0x7f] %v2450
        %2479 = vst [vmem:[%s339 + $0x70] sm:$0x7f] %v2451
        %2480 = vst [vmem:[%s339 + $0x78] sm:$0x7f] %v2452
        %2481 = vst [vmem:[%s339 + $0x80] sm:$0x7f] %v2453
        %2482 = vst [vmem:[%s339 + $0x88] sm:$0x7f] %v2454
        %2483 = vst [vmem:[%s339 + $0x90] sm:$0x7f] %v2455
        %2484 = vst [vmem:[%s339 + $0x98] sm:$0x7f] %v2456
        %2485 = vst [vmem:[%s339 + $0xa0] sm:$0x7f] %v2457
        %2486 = vst [vmem:[%s339 + $0xa8] sm:$0x7f] %v2458
        %2487 = vst [vmem:[%s339 + $0xb0] sm:$0x7f] %v2459
        %2488 = vst [vmem:[%s339 + $0xb8] sm:$0x7f] %v2460
        %2489 = vst [vmem:[%s339 + $0xc0] sm:$0x7f] %v2461
        %2490 = vst [vmem:[%s339 + $0xc8] sm:$0x7f] %v2462
        %2491 = vst [vmem:[%s339 + $0xd0] sm:$0x7f] %v2463
        %2492 = vst [vmem:[%s339 + $0xd8] sm:$0x7f] %v2464
        %s2493 = sand.u32 %s127, 1
        %s2494 = sand.u32 %s127, 1
        %s2495 = smul.addr %s2494, 224
        %s2496 = scalar_lea.vmem [#allocation5], %s2495
        // Predicated region
        $region83: #{tpu_custom_call.1} parent=73 // pred_check
          %p2497 = pneg %p137
        $region84: #{tpu_custom_call.1} parent=73 // pred_check_branch
          %2499 = sbr.rel (%p2497) target = $region86
        $region85: #{tpu_custom_call.1} parent=73 // pred_region
          %s2500 = smul.u32 2, %s15
          %s2501 = smul.addr %s2500, 8
          %s2502 = scalar_lea.vmem %s4, %s2501
          // Predicated region
          $region87: #{tpu_custom_call.1} parent=85 // pred_check
            _
          $region88: #{tpu_custom_call.1} parent=85 // pred_check_branch
            %2504 = sbr.rel (0) target = $region90
          $region89: #{tpu_custom_call.1} parent=85 // pred_region
            // Predicated region
            $region91: #{tpu_custom_call.1} parent=89 // pred_check
              _
            $region92: #{tpu_custom_call.1} parent=89 // pred_check_branch
              %2506 = sbr.rel (0) target = $region94
            $region93: #{tpu_custom_call.1} parent=89 // pred_region
              loop: start=0, step=1, limit=1
              $region95: #{tpu_custom_call.1} parent=93 // loop_pre_header
                _
              $region96: #{tpu_custom_call.1} parent=93 // loop_header
                %s2508 = sphi 0, %s2512
                %p2509 = scmp.ge.s32.totalorder %s2508, 1
                %s2513 = sphi %s2496, %s2496
                %s2514 = sphi %s2502, %s2502
              $region97: #{tpu_custom_call.1} parent=93 // loop_header_branch
                %2511 = sbr.rel (%p2509) target = $region101
              $region98: #{tpu_custom_call.1} parent=93 // loop_body
                %v2515 = vld [vmem:[%s2513] sm:$0xff]
                %2516 = vst [vmem:[%s2514] sm:$0xff] %v2515
                %v2517 = vld [vmem:[%s2513 + $0x8] sm:$0xff]
                %2518 = vst [vmem:[%s2514 + $0x8] sm:$0xff] %v2517
                %v2519 = vld [vmem:[%s2513 + $0x10] sm:$0xff]
                %2520 = vst [vmem:[%s2514 + $0x20] sm:$0xff] %v2519
                %v2521 = vld [vmem:[%s2513 + $0x18] sm:$0xff]
                %2522 = vst [vmem:[%s2514 + $0x28] sm:$0xff] %v2521
                %v2523 = vld [vmem:[%s2513 + $0x20] sm:$0xff]
                %2524 = vst [vmem:[%s2514 + $0x40] sm:$0xff] %v2523
                %v2525 = vld [vmem:[%s2513 + $0x28] sm:$0xff]
                %2526 = vst [vmem:[%s2514 + $0x48] sm:$0xff] %v2525
                %v2527 = vld [vmem:[%s2513 + $0x30] sm:$0xff]
                %2528 = vst [vmem:[%s2514 + $0x60] sm:$0xff] %v2527
                %v2529 = vld [vmem:[%s2513 + $0x38] sm:$0xff]
                %2530 = vst [vmem:[%s2514 + $0x68] sm:$0xff] %v2529
                %v2531 = vld [vmem:[%s2513 + $0x40] sm:$0xff]
                %2532 = vst [vmem:[%s2514 + $0x80] sm:$0xff] %v2531
                %v2533 = vld [vmem:[%s2513 + $0x48] sm:$0xff]
                %2534 = vst [vmem:[%s2514 + $0x88] sm:$0xff] %v2533
                %v2535 = vld [vmem:[%s2513 + $0x50] sm:$0xff]
                %2536 = vst [vmem:[%s2514 + $0xa0] sm:$0xff] %v2535
                %v2537 = vld [vmem:[%s2513 + $0x58] sm:$0xff]
                %2538 = vst [vmem:[%s2514 + $0xa8] sm:$0xff] %v2537
                %v2539 = vld [vmem:[%s2513 + $0x60] sm:$0xff]
                %2540 = vst [vmem:[%s2514 + $0xc0] sm:$0xff] %v2539
                %v2541 = vld [vmem:[%s2513 + $0x68] sm:$0xff]
                %2542 = vst [vmem:[%s2514 + $0xc8] sm:$0xff] %v2541
                %v2543 = vld [vmem:[%s2513 + $0x70] sm:$0xff]
                %2544 = vst [vmem:[%s2514 + $0xe0] sm:$0xff] %v2543
                %v2545 = vld [vmem:[%s2513 + $0x78] sm:$0xff]
                %2546 = vst [vmem:[%s2514 + $0xe8] sm:$0xff] %v2545
                %v2547 = vld [vmem:[%s2513 + $0x80] sm:$0xff]
                %2548 = vst [vmem:[%s2514 + $0x100] sm:$0xff] %v2547
                %v2549 = vld [vmem:[%s2513 + $0x88] sm:$0xff]
                %2550 = vst [vmem:[%s2514 + $0x108] sm:$0xff] %v2549
                %v2551 = vld [vmem:[%s2513 + $0x90] sm:$0xff]
                %2552 = vst [vmem:[%s2514 + $0x120] sm:$0xff] %v2551
                %v2553 = vld [vmem:[%s2513 + $0x98] sm:$0xff]
                %2554 = vst [vmem:[%s2514 + $0x128] sm:$0xff] %v2553
                %v2555 = vld [vmem:[%s2513 + $0xa0] sm:$0xff]
                %2556 = vst [vmem:[%s2514 + $0x140] sm:$0xff] %v2555
                %v2557 = vld [vmem:[%s2513 + $0xa8] sm:$0xff]
                %2558 = vst [vmem:[%s2514 + $0x148] sm:$0xff] %v2557
                %v2559 = vld [vmem:[%s2513 + $0xb0] sm:$0xff]
                %2560 = vst [vmem:[%s2514 + $0x160] sm:$0xff] %v2559
                %v2561 = vld [vmem:[%s2513 + $0xb8] sm:$0xff]
                %2562 = vst [vmem:[%s2514 + $0x168] sm:$0xff] %v2561
                %v2563 = vld [vmem:[%s2513 + $0xc0] sm:$0xff]
                %2564 = vst [vmem:[%s2514 + $0x180] sm:$0xff] %v2563
                %v2565 = vld [vmem:[%s2513 + $0xc8] sm:$0xff]
                %2566 = vst [vmem:[%s2514 + $0x188] sm:$0xff] %v2565
                %v2567 = vld [vmem:[%s2513 + $0xd0] sm:$0xff]
                %2568 = vst [vmem:[%s2514 + $0x1a0] sm:$0xff] %v2567
                %v2569 = vld [vmem:[%s2513 + $0xd8] sm:$0xff]
                %2570 = vst [vmem:[%s2514 + $0x1a8] sm:$0xff] %v2569
              $region99: #{tpu_custom_call.1} parent=93 // loop_footer
                %s2512 = sadd.s32 1, %s2508
              $region100: #{tpu_custom_call.1} parent=93 // loop_footer_branch
                %2507 = sbr.rel target = $region96
              $region101: #{tpu_custom_call.1} parent=93 // loop_exit
                _
            $region94: #{tpu_custom_call.1} parent=89 // pred_fallthru
              _
            // Predicated region
            $region102: #{tpu_custom_call.1} parent=89 // pred_check
              _
            $region103: #{tpu_custom_call.1} parent=89 // pred_check_branch
              %2572 = sbr.rel target = $region105
            $region104: #{tpu_custom_call.1} parent=89 // pred_region
              _
            $region105: #{tpu_custom_call.1} parent=89 // pred_fallthru
              _
          $region90: #{tpu_custom_call.1} parent=85 // pred_fallthru
            _
          %2573 = vnop
        $region86: #{tpu_custom_call.1} parent=73 // pred_fallthru
          _
      $region74: #{tpu_custom_call.1} parent=5 // pred_fallthru
        _
      %p2574 = scmp.le.s32.totalorder 2, %s10
      // Predicated region
      $region106: #{tpu_custom_call.1} parent=5 // pred_check
        %p2575 = pneg %p2574
      $region107: #{tpu_custom_call.1} parent=5 // pred_check_branch
        %2577 = sbr.rel (%p2575) target = $region109
      $region108: #{tpu_custom_call.1} parent=5 // pred_region
        %s2578 = ssub.s32 %s10, 2
        // Predicated region
        $region110: #{tpu_custom_call.1} parent=108 // pred_check
          %p2579 = pneg %p143
        $region111: #{tpu_custom_call.1} parent=108 // pred_check_branch
          %2581 = sbr.rel (%p2579) target = $region113
        $region112: #{tpu_custom_call.1} parent=108 // pred_region
          %s2582 = sand.u32 %s128, 1
          %s2583 = sand.u32 %s128, 1
          %s2584 = smul.addr %s2583, 224
          %s2585 = scalar_lea.vmem [#allocation5], %s2584
        $region113: #{tpu_custom_call.1} parent=108 // pred_fallthru
          _
      $region109: #{tpu_custom_call.1} parent=5 // pred_fallthru
        _
    $region6: #{tpu_custom_call.1} parent=1 // loop_footer
      %s14 = sadd.s32 1, %s10
    $region7: #{tpu_custom_call.1} parent=1 // loop_footer_branch
      %9 = sbr.rel target = $region3
    $region8: #{tpu_custom_call.1} parent=1 // loop_exit
      _

</llo_original>
